<compile_context>
chip_gen: v7x
topology: tpu7x:2x2x1
jax: 0.10.0
libtpu: 0.0.40
codegen_flags: <defaults>
</compile_context>

<pallas_src>
import jax
import jax.numpy as jnp
import numpy as np
from jax import lax
from jax.experimental import pallas as pl
from jax.experimental.pallas import tpu as pltpu


def lstm_ner_kernel(embeds_ref, w_ih_t_ref, w_hh_t_ref, b_gates_ref,
                    w_out_t_ref, b_out_ref, out_ref):
    """Fused LSTM recurrence + hidden2tag + log_softmax for one batch block.

    Gate columns are pre-permuted to (i, f, o, g) and the g columns pre-scaled
    by 2 in the wrapper so a single sigmoid pass covers every gate
    (tanh(x) = 2*sigmoid(2x) - 1).

    embeds_ref : (S, TB, E)   bf16  time-major token embeddings
    w_ih_t_ref : (E, 4H)      bf16
    w_hh_t_ref : (H, 4H)      bf16
    b_gates_ref: (1, 4H)      f32   (= b_ih + b_hh, permuted / g-scaled)
    w_out_t_ref: (H, TP)      bf16  TP = lane-padded tagset size (128)
    b_out_ref  : (1, TP)      f32   (-1e30 on padded lanes)
    out_ref    : (S, TB, TP)  bf16  log-softmax tag scores
    """
    S, TB, E = embeds_ref.shape
    H = w_hh_t_ref.shape[0]

    # Hoist the small weights / biases out of the serial loop.
    w_ih = w_ih_t_ref[...]
    w_hh = w_hh_t_ref[...]
    b_g = b_gates_ref[...]
    w_out = w_out_t_ref[...]
    b_out = b_out_ref[...]

    def step(t, carry):
        h, c = carry                                   # (TB, H) f32, in vregs
        x_t = embeds_ref[t]                            # (TB, E)  bf16
        # Both dots are bf16 MXU matmuls with f32 accumulation; the x_t @ W_ih
        # dot has no dependence on h so it overlaps the previous step's tail.
        gates = (jnp.dot(x_t, w_ih, preferred_element_type=jnp.float32)
                 + jnp.dot(h.astype(jnp.bfloat16), w_hh,
                           preferred_element_type=jnp.float32)
                 + b_g)                                # (TB, 4H) f32
        # Single EUP pass over the whole gate tile (gate order i, f, o, g;
        # g columns were pre-scaled by 2 -> tanh(x) = 2*sigmoid(2x) - 1).
        s = jax.nn.sigmoid(gates)
        i_g = s[:, 0 * H:1 * H]
        f_g = s[:, 1 * H:2 * H]
        o_g = s[:, 2 * H:3 * H]
        g_g = 2.0 * s[:, 3 * H:4 * H] - 1.0            # VPU affine, not EUP
        c_new = f_g * c + i_g * g_g
        h_new = o_g * jnp.tanh(c_new)
        # Fused tag head: lane-dense (TB, 128) logits -> log-softmax -> bf16.
        logits = jnp.dot(h_new.astype(jnp.bfloat16), w_out,
                         preferred_element_type=jnp.float32) + b_out
        m = jnp.max(logits, axis=-1, keepdims=True)
        z = logits - m
        lse = jnp.log(jnp.sum(jnp.exp(z), axis=-1, keepdims=True))
        out_ref[t] = (z - lse).astype(out_ref.dtype)
        return (h_new, c_new)

    h0 = jnp.zeros((TB, H), jnp.float32)
    c0 = jnp.zeros((TB, H), jnp.float32)
    # Partial unroll: keeps LLO overlap of step t's matmuls with step t-1's
    # activation tail without exploding code size / vreg pressure at large S.
    lax.fori_loop(0, S, step, (h0, c0), unroll=min(8, S))


def _round_up(x, m):
    return ((x + m - 1) // m) * m


def lstm_ner_forward(sentence, params):
    """Matches LSTMForNER.forward(sentence) -> tag_scores (B, S, T)."""
    emb_table, w_ih, w_hh, b_ih, b_hh, w_out, b_out = params
    embeds = jnp.take(emb_table, sentence, axis=0)     # glue: embedding lookup
    B, S, E = embeds.shape
    H = w_hh.shape[1]
    T = w_out.shape[0]

    LANE = 128
    # Full-height MXU batch tile at production batch; bf16-friendly pad at
    # toy sizes. n_blocks > 1 at production batch keeps both v7x TCs busy.
    TB = 128 if B >= 128 else _round_up(max(B, 16), 16)
    B_pad = _round_up(B, TB)
    n_blocks = B_pad // TB
    T_pad = _round_up(max(T, LANE), LANE)

    # ---- layout plumbing in XLA, not in the kernel ----
    x = jnp.swapaxes(embeds, 0, 1)                     # (S, B, E) time-major
    x = jnp.pad(x, ((0, 0), (0, B_pad - B), (0, 0))).astype(jnp.bfloat16)

    # Permute PyTorch gate order (i, f, g, o) -> (i, f, o, g) so the sigmoid
    # gates are one contiguous lane range, and pre-scale the g gate by 2 so the
    # kernel needs a single sigmoid pass (tanh(x) = 2*sigmoid(2x) - 1).
    perm = jnp.concatenate([jnp.arange(0, H), jnp.arange(H, 2 * H),
                            jnp.arange(3 * H, 4 * H), jnp.arange(2 * H, 3 * H)])
    g_scale = jnp.concatenate([jnp.ones((3 * H,), jnp.float32),
                               jnp.full((H,), 2.0, jnp.float32)])
    w_ih_t = (w_ih[perm] * g_scale[:, None]).T.astype(jnp.bfloat16)   # (E, 4H)
    w_hh_t = (w_hh[perm] * g_scale[:, None]).T.astype(jnp.bfloat16)   # (H, 4H)
    b_gates = ((b_ih + b_hh)[perm] * g_scale).reshape(1, 4 * H).astype(jnp.float32)

    # Lane-dense tag head: pad weights with 0, bias with -1e30 so padded lanes
    # contribute exp(~-inf) == 0 to the softmax denominator.
    w_out_t = jnp.pad(w_out.T, ((0, 0), (0, T_pad - T))).astype(jnp.bfloat16)
    b_out_p = jnp.pad(b_out.astype(jnp.float32), (0, T_pad - T),
                      constant_values=-1e30).reshape(1, T_pad)

    flops = 2 * B_pad * S * (E * 4 * H + H * 4 * H + H * T_pad)
    transc = B_pad * S * (5 * H + T_pad + 1)           # sigmoid + tanh(c) + exp/log
    bytes_acc = (x.size * 2 + w_ih_t.size * 2 + w_hh_t.size * 2
                 + b_gates.size * 4 + w_out_t.size * 2 + b_out_p.size * 4
                 + S * B_pad * T_pad * 2)

    out = pl.pallas_call(
        lstm_ner_kernel,
        out_shape=jax.ShapeDtypeStruct((S, B_pad, T_pad), jnp.bfloat16),
        grid_spec=pltpu.PrefetchScalarGridSpec(
            num_scalar_prefetch=0,
            grid=(n_blocks,),
            in_specs=[
                pl.BlockSpec((S, TB, E), lambda b: (0, b, 0)),
                pl.BlockSpec((E, 4 * H), lambda b: (0, 0)),
                pl.BlockSpec((H, 4 * H), lambda b: (0, 0)),
                pl.BlockSpec((1, 4 * H), lambda b: (0, 0)),
                pl.BlockSpec((H, T_pad), lambda b: (0, 0)),
                pl.BlockSpec((1, T_pad), lambda b: (0, 0)),
            ],
            out_specs=pl.BlockSpec((S, TB, T_pad), lambda b: (0, b, 0)),
        ),
        compiler_params=pltpu.CompilerParams(
            dimension_semantics=("parallel",),
            vmem_limit_bytes=48 * 1024 * 1024,
        ),
        cost_estimate=pl.CostEstimate(flops=int(flops),
                                      transcendentals=int(transc),
                                      bytes_accessed=int(bytes_acc)),
    )(x, w_ih_t, w_hh_t, b_gates, w_out_t, b_out_p)

    # TODO(synk): at production S the (S, TB, E) / (S, TB, 128) blocks should be
    # chunked over the sequence (second grid axis, h/c carried in VMEM scratch)
    # to bound per-block VMEM independent of S on v7x's 64 MiB.

    # back to batch-first, strip batch/tag padding, restore module's f32 output
    return jnp.swapaxes(out, 0, 1)[:B, :, :T].astype(jnp.float32)


def reference_forward(sentence, params):
    """Pure-JAX f32 reference (mirrors torch semantics)."""
    emb_table, w_ih, w_hh, b_ih, b_hh, w_out, b_out = params
    embeds = jnp.take(emb_table, sentence, axis=0)     # (B, S, E)
    B, S, E = embeds.shape
    H = w_hh.shape[1]

    def step(carry, x_t):
        h, c = carry
        gates = x_t @ w_ih.T + b_ih + h @ w_hh.T + b_hh
        i_g = jax.nn.sigmoid(gates[:, 0 * H:1 * H])
        f_g = jax.nn.sigmoid(gates[:, 1 * H:2 * H])
        g_g = jnp.tanh(gates[:, 2 * H:3 * H])
        o_g = jax.nn.sigmoid(gates[:, 3 * H:4 * H])
        c_new = f_g * c + i_g * g_g
        h_new = o_g * jnp.tanh(c_new)
        return (h_new, c_new), h_new

    xs = embeds.transpose(1, 0, 2)                     # (S, B, E)
    h0 = jnp.zeros((B, H), jnp.float32)
    c0 = jnp.zeros((B, H), jnp.float32)
    _, hs = lax.scan(step, (h0, c0), xs)               # (S, B, H)
    hs = hs.transpose(1, 0, 2)                         # (B, S, H)
    logits = hs @ w_out.T + b_out
    return jax.nn.log_softmax(logits, axis=-1)


if __name__ == "__main__":
    # Small, module-consistent sizes.
    VOCAB, TAGS, EMBED, HIDDEN = 50, 8, 32, 32
    B, S = 2, 8

    key = jax.random.PRNGKey(0)
    k_emb, k_wih, k_whh, k_bih, k_bhh, k_wo, k_bo, k_sent = jax.random.split(key, 8)

    bound = 1.0 / np.sqrt(HIDDEN)
    params = (
        jax.random.normal(k_emb, (VOCAB, EMBED), jnp.float32),                       # embedding table
        jax.random.uniform(k_wih, (4 * HIDDEN, EMBED), jnp.float32, -bound, bound),  # weight_ih_l0
        jax.random.uniform(k_whh, (4 * HIDDEN, HIDDEN), jnp.float32, -bound, bound), # weight_hh_l0
        jax.random.uniform(k_bih, (4 * HIDDEN,), jnp.float32, -bound, bound),        # bias_ih_l0
        jax.random.uniform(k_bhh, (4 * HIDDEN,), jnp.float32, -bound, bound),        # bias_hh_l0
        jax.random.uniform(k_wo, (TAGS, HIDDEN), jnp.float32, -bound, bound),        # hidden2tag.weight
        jax.random.uniform(k_bo, (TAGS,), jnp.float32, -bound, bound),               # hidden2tag.bias
    )
    sentence = jax.random.randint(k_sent, (B, S), 0, VOCAB, dtype=jnp.int32)

    tag_scores = lstm_ner_forward(sentence, params)
    tag_scores = jax.block_until_ready(tag_scores)

    assert tag_scores.shape == (B, S, TAGS)
    ref = jax.block_until_ready(reference_forward(sentence, params))
    np.testing.assert_allclose(np.asarray(tag_scores), np.asarray(ref),
                               rtol=5e-2, atol=5e-2)

    print("KERNEL_OK")
</pallas_src>

<mosaic_0001>
module attributes {stable_mosaic.version = 11 : i64} {
  func.func @lstm_ner_kernel(%arg0: i32, %arg1: memref<8x16x32xbf16, #tpu.memory_space<vmem>>, %arg2: memref<32x128xbf16, #tpu.memory_space<vmem>>, %arg3: memref<32x128xbf16, #tpu.memory_space<vmem>>, %arg4: memref<1x128xf32, #tpu.memory_space<vmem>>, %arg5: memref<32x128xbf16, #tpu.memory_space<vmem>>, %arg6: memref<1x128xf32, #tpu.memory_space<vmem>>, %arg7: memref<8x16x128xbf16, #tpu.memory_space<vmem>>) attributes {dimension_semantics = [#tpu.dimension_semantics<parallel>], iteration_bounds = array<i64: 1>, scalar_prefetch = 0 : i64, scratch_operands = 0 : i64, tpu.core_type = #tpu.core_type<tc>, window_params = [{transform_indices = @transform_0, window_bounds = array<i64: 8, 16, 32>}, {pipeline_mode = #tpu.pipeline_mode<synchronous>, transform_indices = @transform_1, window_bounds = array<i64: 32, 128>}, {pipeline_mode = #tpu.pipeline_mode<synchronous>, transform_indices = @transform_2, window_bounds = array<i64: 32, 128>}, {pipeline_mode = #tpu.pipeline_mode<synchronous>, transform_indices = @transform_3, window_bounds = array<i64: 1, 128>}, {pipeline_mode = #tpu.pipeline_mode<synchronous>, transform_indices = @transform_4, window_bounds = array<i64: 32, 128>}, {pipeline_mode = #tpu.pipeline_mode<synchronous>, transform_indices = @transform_5, window_bounds = array<i64: 1, 128>}, {transform_indices = @transform_6, window_bounds = array<i64: 8, 16, 128>}]} {
    %c0 = arith.constant 0 : index
    %c0_0 = arith.constant 0 : index
    %0 = vector.load %arg2[%c0, %c0_0] : memref<32x128xbf16, #tpu.memory_space<vmem>>, vector<32x128xbf16>
    %c0_1 = arith.constant 0 : index
    %c0_2 = arith.constant 0 : index
    %1 = vector.load %arg3[%c0_1, %c0_2] : memref<32x128xbf16, #tpu.memory_space<vmem>>, vector<32x128xbf16>
    %c0_3 = arith.constant 0 : index
    %c0_4 = arith.constant 0 : index
    %2 = vector.load %arg4[%c0_3, %c0_4] : memref<1x128xf32, #tpu.memory_space<vmem>>, vector<1x128xf32>
    %c0_5 = arith.constant 0 : index
    %c0_6 = arith.constant 0 : index
    %3 = vector.load %arg5[%c0_5, %c0_6] : memref<32x128xbf16, #tpu.memory_space<vmem>>, vector<32x128xbf16>
    %c0_7 = arith.constant 0 : index
    %c0_8 = arith.constant 0 : index
    %4 = vector.load %arg6[%c0_7, %c0_8] : memref<1x128xf32, #tpu.memory_space<vmem>>, vector<1x128xf32>
    %cst = arith.constant 0.000000e+00 : f32
    %5 = vector.broadcast %cst : f32 to vector<16x32xf32>
    %cst_9 = arith.constant 0.000000e+00 : f32
    %6 = vector.broadcast %cst_9 : f32 to vector<16x32xf32>
    %c0_i32 = arith.constant 0 : i32
    %7 = arith.index_cast %c0_i32 : i32 to index
    %c0_10 = arith.constant 0 : index
    %c0_11 = arith.constant 0 : index
    %8 = vector.load %arg1[%7, %c0_10, %c0_11] : memref<8x16x32xbf16, #tpu.memory_space<vmem>>, vector<1x16x32xbf16>
    %9 = vector.shape_cast %8 : vector<1x16x32xbf16> to vector<16x32xbf16>
    %cst_12 = arith.constant dense<0.000000e+00> : vector<16x128xf32>
    %10 = tpu.matmul %9, %0, %cst_12 {dimension_numbers = #tpu.dot_dimension_numbers<[1], [0], [0], [1], [0, 0, 1, 1], [], []>} : vector<16x32xbf16>, vector<32x128xbf16>, vector<16x128xf32> -> vector<16x128xf32>
    %11 = arith.truncf %5 : vector<16x32xf32> to vector<16x32xbf16>
    %cst_13 = arith.constant dense<0.000000e+00> : vector<16x128xf32>
    %12 = tpu.matmul %11, %1, %cst_13 {dimension_numbers = #tpu.dot_dimension_numbers<[1], [0], [0], [1], [0, 0, 1, 1], [], []>} : vector<16x32xbf16>, vector<32x128xbf16>, vector<16x128xf32> -> vector<16x128xf32>
    %13 = arith.addf %10, %12 : vector<16x128xf32>
    %14 = vector.broadcast %2 : vector<1x128xf32> to vector<16x128xf32>
    %15 = arith.addf %13, %14 : vector<16x128xf32>
    %16 = arith.negf %15 : vector<16x128xf32>
    %17 = math.exp %16 : vector<16x128xf32>
    %cst_14 = arith.constant 1.000000e+00 : f32
    %18 = vector.broadcast %cst_14 : f32 to vector<16x128xf32>
    %19 = arith.addf %18, %17 : vector<16x128xf32>
    %20 = arith.divf %18, %19 : vector<16x128xf32>
    %21 = vector.extract_strided_slice %20 {offsets = [0, 0], sizes = [16, 32], strides = [1, 1]} : vector<16x128xf32> to vector<16x32xf32>
    %22 = vector.extract_strided_slice %20 {offsets = [0, 32], sizes = [16, 32], strides = [1, 1]} : vector<16x128xf32> to vector<16x32xf32>
    %23 = vector.extract_strided_slice %20 {offsets = [0, 64], sizes = [16, 32], strides = [1, 1]} : vector<16x128xf32> to vector<16x32xf32>
    %24 = vector.extract_strided_slice %20 {offsets = [0, 96], sizes = [16, 32], strides = [1, 1]} : vector<16x128xf32> to vector<16x32xf32>
    %cst_15 = arith.constant 2.000000e+00 : f32
    %25 = vector.broadcast %cst_15 : f32 to vector<16x32xf32>
    %26 = arith.mulf %25, %24 : vector<16x32xf32>
    %cst_16 = arith.constant 1.000000e+00 : f32
    %27 = vector.broadcast %cst_16 : f32 to vector<16x32xf32>
    %28 = arith.subf %26, %27 : vector<16x32xf32>
    %29 = arith.mulf %22, %6 : vector<16x32xf32>
    %30 = arith.mulf %21, %28 : vector<16x32xf32>
    %31 = arith.addf %29, %30 : vector<16x32xf32>
    %32 = math.tanh %31 : vector<16x32xf32>
    %33 = arith.mulf %23, %32 : vector<16x32xf32>
    %34 = arith.truncf %33 : vector<16x32xf32> to vector<16x32xbf16>
    %cst_17 = arith.constant dense<0.000000e+00> : vector<16x128xf32>
    %35 = tpu.matmul %34, %3, %cst_17 {dimension_numbers = #tpu.dot_dimension_numbers<[1], [0], [0], [1], [0, 0, 1, 1], [], []>} : vector<16x32xbf16>, vector<32x128xbf16>, vector<16x128xf32> -> vector<16x128xf32>
    %36 = vector.broadcast %4 : vector<1x128xf32> to vector<16x128xf32>
    %37 = arith.addf %35, %36 : vector<16x128xf32>
    %cst_18 = arith.constant dense<0xFF800000> : vector<16xf32>
    %38 = vector.multi_reduction <maximumf>, %37, %cst_18 [1] : vector<16x128xf32> to vector<16xf32>
    %39 = vector.shape_cast %38 : vector<16xf32> to vector<16x1xf32>
    %40 = vector.broadcast %39 : vector<16x1xf32> to vector<16x128xf32>
    %41 = arith.subf %37, %40 : vector<16x128xf32>
    %42 = math.exp %41 : vector<16x128xf32>
    %cst_19 = arith.constant dense<0.000000e+00> : vector<16xf32>
    %43 = vector.multi_reduction <add>, %42, %cst_19 [1] : vector<16x128xf32> to vector<16xf32>
    %44 = vector.shape_cast %43 : vector<16xf32> to vector<16x1xf32>
    %45 = math.log %44 : vector<16x1xf32>
    %46 = vector.broadcast %45 : vector<16x1xf32> to vector<16x128xf32>
    %47 = arith.subf %41, %46 : vector<16x128xf32>
    %48 = arith.truncf %47 : vector<16x128xf32> to vector<16x128xbf16>
    %49 = arith.index_cast %c0_i32 : i32 to index
    %c0_20 = arith.constant 0 : index
    %c0_21 = arith.constant 0 : index
    %50 = vector.load %arg7[%49, %c0_20, %c0_21] : memref<8x16x128xbf16, #tpu.memory_space<vmem>>, vector<1x16x128xbf16>
    %51 = vector.shape_cast %50 : vector<1x16x128xbf16> to vector<16x128xbf16>
    %52 = vector.shape_cast %48 : vector<16x128xbf16> to vector<1x16x128xbf16>
    tpu.vector_store %arg7[%49, %c0_20, %c0_21], %52 {strides = array<i32>} : memref<8x16x128xbf16, #tpu.memory_space<vmem>>, vector<1x16x128xbf16>,
    %c1_i32 = arith.constant 1 : i32
    %53 = arith.index_cast %c1_i32 : i32 to index
    %c0_22 = arith.constant 0 : index
    %c0_23 = arith.constant 0 : index
    %54 = vector.load %arg1[%53, %c0_22, %c0_23] : memref<8x16x32xbf16, #tpu.memory_space<vmem>>, vector<1x16x32xbf16>
    %55 = vector.shape_cast %54 : vector<1x16x32xbf16> to vector<16x32xbf16>
    %cst_24 = arith.constant dense<0.000000e+00> : vector<16x128xf32>
    %56 = tpu.matmul %55, %0, %cst_24 {dimension_numbers = #tpu.dot_dimension_numbers<[1], [0], [0], [1], [0, 0, 1, 1], [], []>} : vector<16x32xbf16>, vector<32x128xbf16>, vector<16x128xf32> -> vector<16x128xf32>
    %57 = arith.truncf %33 : vector<16x32xf32> to vector<16x32xbf16>
    %cst_25 = arith.constant dense<0.000000e+00> : vector<16x128xf32>
    %58 = tpu.matmul %57, %1, %cst_25 {dimension_numbers = #tpu.dot_dimension_numbers<[1], [0], [0], [1], [0, 0, 1, 1], [], []>} : vector<16x32xbf16>, vector<32x128xbf16>, vector<16x128xf32> -> vector<16x128xf32>
    %59 = arith.addf %56, %58 : vector<16x128xf32>
    %60 = vector.broadcast %2 : vector<1x128xf32> to vector<16x128xf32>
    %61 = arith.addf %59, %60 : vector<16x128xf32>
    %62 = arith.negf %61 : vector<16x128xf32>
    %63 = math.exp %62 : vector<16x128xf32>
    %cst_26 = arith.constant 1.000000e+00 : f32
    %64 = vector.broadcast %cst_26 : f32 to vector<16x128xf32>
    %65 = arith.addf %64, %63 : vector<16x128xf32>
    %66 = arith.divf %64, %65 : vector<16x128xf32>
    %67 = vector.extract_strided_slice %66 {offsets = [0, 0], sizes = [16, 32], strides = [1, 1]} : vector<16x128xf32> to vector<16x32xf32>
    %68 = vector.extract_strided_slice %66 {offsets = [0, 32], sizes = [16, 32], strides = [1, 1]} : vector<16x128xf32> to vector<16x32xf32>
    %69 = vector.extract_strided_slice %66 {offsets = [0, 64], sizes = [16, 32], strides = [1, 1]} : vector<16x128xf32> to vector<16x32xf32>
    %70 = vector.extract_strided_slice %66 {offsets = [0, 96], sizes = [16, 32], strides = [1, 1]} : vector<16x128xf32> to vector<16x32xf32>
    %cst_27 = arith.constant 2.000000e+00 : f32
    %71 = vector.broadcast %cst_27 : f32 to vector<16x32xf32>
    %72 = arith.mulf %71, %70 : vector<16x32xf32>
    %cst_28 = arith.constant 1.000000e+00 : f32
    %73 = vector.broadcast %cst_28 : f32 to vector<16x32xf32>
    %74 = arith.subf %72, %73 : vector<16x32xf32>
    %75 = arith.mulf %68, %31 : vector<16x32xf32>
    %76 = arith.mulf %67, %74 : vector<16x32xf32>
    %77 = arith.addf %75, %76 : vector<16x32xf32>
    %78 = math.tanh %77 : vector<16x32xf32>
    %79 = arith.mulf %69, %78 : vector<16x32xf32>
    %80 = arith.truncf %79 : vector<16x32xf32> to vector<16x32xbf16>
    %cst_29 = arith.constant dense<0.000000e+00> : vector<16x128xf32>
    %81 = tpu.matmul %80, %3, %cst_29 {dimension_numbers = #tpu.dot_dimension_numbers<[1], [0], [0], [1], [0, 0, 1, 1], [], []>} : vector<16x32xbf16>, vector<32x128xbf16>, vector<16x128xf32> -> vector<16x128xf32>
    %82 = vector.broadcast %4 : vector<1x128xf32> to vector<16x128xf32>
    %83 = arith.addf %81, %82 : vector<16x128xf32>
    %cst_30 = arith.constant dense<0xFF800000> : vector<16xf32>
    %84 = vector.multi_reduction <maximumf>, %83, %cst_30 [1] : vector<16x128xf32> to vector<16xf32>
    %85 = vector.shape_cast %84 : vector<16xf32> to vector<16x1xf32>
    %86 = vector.broadcast %85 : vector<16x1xf32> to vector<16x128xf32>
    %87 = arith.subf %83, %86 : vector<16x128xf32>
    %88 = math.exp %87 : vector<16x128xf32>
    %cst_31 = arith.constant dense<0.000000e+00> : vector<16xf32>
    %89 = vector.multi_reduction <add>, %88, %cst_31 [1] : vector<16x128xf32> to vector<16xf32>
    %90 = vector.shape_cast %89 : vector<16xf32> to vector<16x1xf32>
    %91 = math.log %90 : vector<16x1xf32>
    %92 = vector.broadcast %91 : vector<16x1xf32> to vector<16x128xf32>
    %93 = arith.subf %87, %92 : vector<16x128xf32>
    %94 = arith.truncf %93 : vector<16x128xf32> to vector<16x128xbf16>
    %95 = arith.index_cast %c1_i32 : i32 to index
    %c0_32 = arith.constant 0 : index
    %c0_33 = arith.constant 0 : index
    %96 = vector.load %arg7[%95, %c0_32, %c0_33] : memref<8x16x128xbf16, #tpu.memory_space<vmem>>, vector<1x16x128xbf16>
    %97 = vector.shape_cast %96 : vector<1x16x128xbf16> to vector<16x128xbf16>
    %98 = vector.shape_cast %94 : vector<16x128xbf16> to vector<1x16x128xbf16>
    tpu.vector_store %arg7[%95, %c0_32, %c0_33], %98 {strides = array<i32>} : memref<8x16x128xbf16, #tpu.memory_space<vmem>>, vector<1x16x128xbf16>,
    %c2_i32 = arith.constant 2 : i32
    %99 = arith.index_cast %c2_i32 : i32 to index
    %c0_34 = arith.constant 0 : index
    %c0_35 = arith.constant 0 : index
    %100 = vector.load %arg1[%99, %c0_34, %c0_35] : memref<8x16x32xbf16, #tpu.memory_space<vmem>>, vector<1x16x32xbf16>
    %101 = vector.shape_cast %100 : vector<1x16x32xbf16> to vector<16x32xbf16>
    %cst_36 = arith.constant dense<0.000000e+00> : vector<16x128xf32>
    %102 = tpu.matmul %101, %0, %cst_36 {dimension_numbers = #tpu.dot_dimension_numbers<[1], [0], [0], [1], [0, 0, 1, 1], [], []>} : vector<16x32xbf16>, vector<32x128xbf16>, vector<16x128xf32> -> vector<16x128xf32>
    %103 = arith.truncf %79 : vector<16x32xf32> to vector<16x32xbf16>
    %cst_37 = arith.constant dense<0.000000e+00> : vector<16x128xf32>
    %104 = tpu.matmul %103, %1, %cst_37 {dimension_numbers = #tpu.dot_dimension_numbers<[1], [0], [0], [1], [0, 0, 1, 1], [], []>} : vector<16x32xbf16>, vector<32x128xbf16>, vector<16x128xf32> -> vector<16x128xf32>
    %105 = arith.addf %102, %104 : vector<16x128xf32>
    %106 = vector.broadcast %2 : vector<1x128xf32> to vector<16x128xf32>
    %107 = arith.addf %105, %106 : vector<16x128xf32>
    %108 = arith.negf %107 : vector<16x128xf32>
    %109 = math.exp %108 : vector<16x128xf32>
    %cst_38 = arith.constant 1.000000e+00 : f32
    %110 = vector.broadcast %cst_38 : f32 to vector<16x128xf32>
    %111 = arith.addf %110, %109 : vector<16x128xf32>
    %112 = arith.divf %110, %111 : vector<16x128xf32>
    %113 = vector.extract_strided_slice %112 {offsets = [0, 0], sizes = [16, 32], strides = [1, 1]} : vector<16x128xf32> to vector<16x32xf32>
    %114 = vector.extract_strided_slice %112 {offsets = [0, 32], sizes = [16, 32], strides = [1, 1]} : vector<16x128xf32> to vector<16x32xf32>
    %115 = vector.extract_strided_slice %112 {offsets = [0, 64], sizes = [16, 32], strides = [1, 1]} : vector<16x128xf32> to vector<16x32xf32>
    %116 = vector.extract_strided_slice %112 {offsets = [0, 96], sizes = [16, 32], strides = [1, 1]} : vector<16x128xf32> to vector<16x32xf32>
    %cst_39 = arith.constant 2.000000e+00 : f32
    %117 = vector.broadcast %cst_39 : f32 to vector<16x32xf32>
    %118 = arith.mulf %117, %116 : vector<16x32xf32>
    %cst_40 = arith.constant 1.000000e+00 : f32
    %119 = vector.broadcast %cst_40 : f32 to vector<16x32xf32>
    %120 = arith.subf %118, %119 : vector<16x32xf32>
    %121 = arith.mulf %114, %77 : vector<16x32xf32>
    %122 = arith.mulf %113, %120 : vector<16x32xf32>
    %123 = arith.addf %121, %122 : vector<16x32xf32>
    %124 = math.tanh %123 : vector<16x32xf32>
    %125 = arith.mulf %115, %124 : vector<16x32xf32>
    %126 = arith.truncf %125 : vector<16x32xf32> to vector<16x32xbf16>
    %cst_41 = arith.constant dense<0.000000e+00> : vector<16x128xf32>
    %127 = tpu.matmul %126, %3, %cst_41 {dimension_numbers = #tpu.dot_dimension_numbers<[1], [0], [0], [1], [0, 0, 1, 1], [], []>} : vector<16x32xbf16>, vector<32x128xbf16>, vector<16x128xf32> -> vector<16x128xf32>
    %128 = vector.broadcast %4 : vector<1x128xf32> to vector<16x128xf32>
    %129 = arith.addf %127, %128 : vector<16x128xf32>
    %cst_42 = arith.constant dense<0xFF800000> : vector<16xf32>
    %130 = vector.multi_reduction <maximumf>, %129, %cst_42 [1] : vector<16x128xf32> to vector<16xf32>
    %131 = vector.shape_cast %130 : vector<16xf32> to vector<16x1xf32>
    %132 = vector.broadcast %131 : vector<16x1xf32> to vector<16x128xf32>
    %133 = arith.subf %129, %132 : vector<16x128xf32>
    %134 = math.exp %133 : vector<16x128xf32>
    %cst_43 = arith.constant dense<0.000000e+00> : vector<16xf32>
    %135 = vector.multi_reduction <add>, %134, %cst_43 [1] : vector<16x128xf32> to vector<16xf32>
    %136 = vector.shape_cast %135 : vector<16xf32> to vector<16x1xf32>
    %137 = math.log %136 : vector<16x1xf32>
    %138 = vector.broadcast %137 : vector<16x1xf32> to vector<16x128xf32>
    %139 = arith.subf %133, %138 : vector<16x128xf32>
    %140 = arith.truncf %139 : vector<16x128xf32> to vector<16x128xbf16>
    %141 = arith.index_cast %c2_i32 : i32 to index
    %c0_44 = arith.constant 0 : index
    %c0_45 = arith.constant 0 : index
    %142 = vector.load %arg7[%141, %c0_44, %c0_45] : memref<8x16x128xbf16, #tpu.memory_space<vmem>>, vector<1x16x128xbf16>
    %143 = vector.shape_cast %142 : vector<1x16x128xbf16> to vector<16x128xbf16>
    %144 = vector.shape_cast %140 : vector<16x128xbf16> to vector<1x16x128xbf16>
    tpu.vector_store %arg7[%141, %c0_44, %c0_45], %144 {strides = array<i32>} : memref<8x16x128xbf16, #tpu.memory_space<vmem>>, vector<1x16x128xbf16>,
    %c3_i32 = arith.constant 3 : i32
    %145 = arith.index_cast %c3_i32 : i32 to index
    %c0_46 = arith.constant 0 : index
    %c0_47 = arith.constant 0 : index
    %146 = vector.load %arg1[%145, %c0_46, %c0_47] : memref<8x16x32xbf16, #tpu.memory_space<vmem>>, vector<1x16x32xbf16>
    %147 = vector.shape_cast %146 : vector<1x16x32xbf16> to vector<16x32xbf16>
    %cst_48 = arith.constant dense<0.000000e+00> : vector<16x128xf32>
    %148 = tpu.matmul %147, %0, %cst_48 {dimension_numbers = #tpu.dot_dimension_numbers<[1], [0], [0], [1], [0, 0, 1, 1], [], []>} : vector<16x32xbf16>, vector<32x128xbf16>, vector<16x128xf32> -> vector<16x128xf32>
    %149 = arith.truncf %125 : vector<16x32xf32> to vector<16x32xbf16>
    %cst_49 = arith.constant dense<0.000000e+00> : vector<16x128xf32>
    %150 = tpu.matmul %149, %1, %cst_49 {dimension_numbers = #tpu.dot_dimension_numbers<[1], [0], [0], [1], [0, 0, 1, 1], [], []>} : vector<16x32xbf16>, vector<32x128xbf16>, vector<16x128xf32> -> vector<16x128xf32>
    %151 = arith.addf %148, %150 : vector<16x128xf32>
    %152 = vector.broadcast %2 : vector<1x128xf32> to vector<16x128xf32>
    %153 = arith.addf %151, %152 : vector<16x128xf32>
    %154 = arith.negf %153 : vector<16x128xf32>
    %155 = math.exp %154 : vector<16x128xf32>
    %cst_50 = arith.constant 1.000000e+00 : f32
    %156 = vector.broadcast %cst_50 : f32 to vector<16x128xf32>
    %157 = arith.addf %156, %155 : vector<16x128xf32>
    %158 = arith.divf %156, %157 : vector<16x128xf32>
    %159 = vector.extract_strided_slice %158 {offsets = [0, 0], sizes = [16, 32], strides = [1, 1]} : vector<16x128xf32> to vector<16x32xf32>
    %160 = vector.extract_strided_slice %158 {offsets = [0, 32], sizes = [16, 32], strides = [1, 1]} : vector<16x128xf32> to vector<16x32xf32>
    %161 = vector.extract_strided_slice %158 {offsets = [0, 64], sizes = [16, 32], strides = [1, 1]} : vector<16x128xf32> to vector<16x32xf32>
    %162 = vector.extract_strided_slice %158 {offsets = [0, 96], sizes = [16, 32], strides = [1, 1]} : vector<16x128xf32> to vector<16x32xf32>
    %cst_51 = arith.constant 2.000000e+00 : f32
    %163 = vector.broadcast %cst_51 : f32 to vector<16x32xf32>
    %164 = arith.mulf %163, %162 : vector<16x32xf32>
    %cst_52 = arith.constant 1.000000e+00 : f32
    %165 = vector.broadcast %cst_52 : f32 to vector<16x32xf32>
    %166 = arith.subf %164, %165 : vector<16x32xf32>
    %167 = arith.mulf %160, %123 : vector<16x32xf32>
    %168 = arith.mulf %159, %166 : vector<16x32xf32>
    %169 = arith.addf %167, %168 : vector<16x32xf32>
    %170 = math.tanh %169 : vector<16x32xf32>
    %171 = arith.mulf %161, %170 : vector<16x32xf32>
    %172 = arith.truncf %171 : vector<16x32xf32> to vector<16x32xbf16>
    %cst_53 = arith.constant dense<0.000000e+00> : vector<16x128xf32>
    %173 = tpu.matmul %172, %3, %cst_53 {dimension_numbers = #tpu.dot_dimension_numbers<[1], [0], [0], [1], [0, 0, 1, 1], [], []>} : vector<16x32xbf16>, vector<32x128xbf16>, vector<16x128xf32> -> vector<16x128xf32>
    %174 = vector.broadcast %4 : vector<1x128xf32> to vector<16x128xf32>
    %175 = arith.addf %173, %174 : vector<16x128xf32>
    %cst_54 = arith.constant dense<0xFF800000> : vector<16xf32>
    %176 = vector.multi_reduction <maximumf>, %175, %cst_54 [1] : vector<16x128xf32> to vector<16xf32>
    %177 = vector.shape_cast %176 : vector<16xf32> to vector<16x1xf32>
    %178 = vector.broadcast %177 : vector<16x1xf32> to vector<16x128xf32>
    %179 = arith.subf %175, %178 : vector<16x128xf32>
    %180 = math.exp %179 : vector<16x128xf32>
    %cst_55 = arith.constant dense<0.000000e+00> : vector<16xf32>
    %181 = vector.multi_reduction <add>, %180, %cst_55 [1] : vector<16x128xf32> to vector<16xf32>
    %182 = vector.shape_cast %181 : vector<16xf32> to vector<16x1xf32>
    %183 = math.log %182 : vector<16x1xf32>
    %184 = vector.broadcast %183 : vector<16x1xf32> to vector<16x128xf32>
    %185 = arith.subf %179, %184 : vector<16x128xf32>
    %186 = arith.truncf %185 : vector<16x128xf32> to vector<16x128xbf16>
    %187 = arith.index_cast %c3_i32 : i32 to index
    %c0_56 = arith.constant 0 : index
    %c0_57 = arith.constant 0 : index
    %188 = vector.load %arg7[%187, %c0_56, %c0_57] : memref<8x16x128xbf16, #tpu.memory_space<vmem>>, vector<1x16x128xbf16>
    %189 = vector.shape_cast %188 : vector<1x16x128xbf16> to vector<16x128xbf16>
    %190 = vector.shape_cast %186 : vector<16x128xbf16> to vector<1x16x128xbf16>
    tpu.vector_store %arg7[%187, %c0_56, %c0_57], %190 {strides = array<i32>} : memref<8x16x128xbf16, #tpu.memory_space<vmem>>, vector<1x16x128xbf16>,
    %c4_i32 = arith.constant 4 : i32
    %191 = arith.index_cast %c4_i32 : i32 to index
    %c0_58 = arith.constant 0 : index
    %c0_59 = arith.constant 0 : index
    %192 = vector.load %arg1[%191, %c0_58, %c0_59] : memref<8x16x32xbf16, #tpu.memory_space<vmem>>, vector<1x16x32xbf16>
    %193 = vector.shape_cast %192 : vector<1x16x32xbf16> to vector<16x32xbf16>
    %cst_60 = arith.constant dense<0.000000e+00> : vector<16x128xf32>
    %194 = tpu.matmul %193, %0, %cst_60 {dimension_numbers = #tpu.dot_dimension_numbers<[1], [0], [0], [1], [0, 0, 1, 1], [], []>} : vector<16x32xbf16>, vector<32x128xbf16>, vector<16x128xf32> -> vector<16x128xf32>
    %195 = arith.truncf %171 : vector<16x32xf32> to vector<16x32xbf16>
    %cst_61 = arith.constant dense<0.000000e+00> : vector<16x128xf32>
    %196 = tpu.matmul %195, %1, %cst_61 {dimension_numbers = #tpu.dot_dimension_numbers<[1], [0], [0], [1], [0, 0, 1, 1], [], []>} : vector<16x32xbf16>, vector<32x128xbf16>, vector<16x128xf32> -> vector<16x128xf32>
    %197 = arith.addf %194, %196 : vector<16x128xf32>
    %198 = vector.broadcast %2 : vector<1x128xf32> to vector<16x128xf32>
    %199 = arith.addf %197, %198 : vector<16x128xf32>
    %200 = arith.negf %199 : vector<16x128xf32>
    %201 = math.exp %200 : vector<16x128xf32>
    %cst_62 = arith.constant 1.000000e+00 : f32
    %202 = vector.broadcast %cst_62 : f32 to vector<16x128xf32>
    %203 = arith.addf %202, %201 : vector<16x128xf32>
    %204 = arith.divf %202, %203 : vector<16x128xf32>
    %205 = vector.extract_strided_slice %204 {offsets = [0, 0], sizes = [16, 32], strides = [1, 1]} : vector<16x128xf32> to vector<16x32xf32>
    %206 = vector.extract_strided_slice %204 {offsets = [0, 32], sizes = [16, 32], strides = [1, 1]} : vector<16x128xf32> to vector<16x32xf32>
    %207 = vector.extract_strided_slice %204 {offsets = [0, 64], sizes = [16, 32], strides = [1, 1]} : vector<16x128xf32> to vector<16x32xf32>
    %208 = vector.extract_strided_slice %204 {offsets = [0, 96], sizes = [16, 32], strides = [1, 1]} : vector<16x128xf32> to vector<16x32xf32>
    %cst_63 = arith.constant 2.000000e+00 : f32
    %209 = vector.broadcast %cst_63 : f32 to vector<16x32xf32>
    %210 = arith.mulf %209, %208 : vector<16x32xf32>
    %cst_64 = arith.constant 1.000000e+00 : f32
    %211 = vector.broadcast %cst_64 : f32 to vector<16x32xf32>
    %212 = arith.subf %210, %211 : vector<16x32xf32>
    %213 = arith.mulf %206, %169 : vector<16x32xf32>
    %214 = arith.mulf %205, %212 : vector<16x32xf32>
    %215 = arith.addf %213, %214 : vector<16x32xf32>
    %216 = math.tanh %215 : vector<16x32xf32>
    %217 = arith.mulf %207, %216 : vector<16x32xf32>
    %218 = arith.truncf %217 : vector<16x32xf32> to vector<16x32xbf16>
    %cst_65 = arith.constant dense<0.000000e+00> : vector<16x128xf32>
    %219 = tpu.matmul %218, %3, %cst_65 {dimension_numbers = #tpu.dot_dimension_numbers<[1], [0], [0], [1], [0, 0, 1, 1], [], []>} : vector<16x32xbf16>, vector<32x128xbf16>, vector<16x128xf32> -> vector<16x128xf32>
    %220 = vector.broadcast %4 : vector<1x128xf32> to vector<16x128xf32>
    %221 = arith.addf %219, %220 : vector<16x128xf32>
    %cst_66 = arith.constant dense<0xFF800000> : vector<16xf32>
    %222 = vector.multi_reduction <maximumf>, %221, %cst_66 [1] : vector<16x128xf32> to vector<16xf32>
    %223 = vector.shape_cast %222 : vector<16xf32> to vector<16x1xf32>
    %224 = vector.broadcast %223 : vector<16x1xf32> to vector<16x128xf32>
    %225 = arith.subf %221, %224 : vector<16x128xf32>
    %226 = math.exp %225 : vector<16x128xf32>
    %cst_67 = arith.constant dense<0.000000e+00> : vector<16xf32>
    %227 = vector.multi_reduction <add>, %226, %cst_67 [1] : vector<16x128xf32> to vector<16xf32>
    %228 = vector.shape_cast %227 : vector<16xf32> to vector<16x1xf32>
    %229 = math.log %228 : vector<16x1xf32>
    %230 = vector.broadcast %229 : vector<16x1xf32> to vector<16x128xf32>
    %231 = arith.subf %225, %230 : vector<16x128xf32>
    %232 = arith.truncf %231 : vector<16x128xf32> to vector<16x128xbf16>
    %233 = arith.index_cast %c4_i32 : i32 to index
    %c0_68 = arith.constant 0 : index
    %c0_69 = arith.constant 0 : index
    %234 = vector.load %arg7[%233, %c0_68, %c0_69] : memref<8x16x128xbf16, #tpu.memory_space<vmem>>, vector<1x16x128xbf16>
    %235 = vector.shape_cast %234 : vector<1x16x128xbf16> to vector<16x128xbf16>
    %236 = vector.shape_cast %232 : vector<16x128xbf16> to vector<1x16x128xbf16>
    tpu.vector_store %arg7[%233, %c0_68, %c0_69], %236 {strides = array<i32>} : memref<8x16x128xbf16, #tpu.memory_space<vmem>>, vector<1x16x128xbf16>,
    %c5_i32 = arith.constant 5 : i32
    %237 = arith.index_cast %c5_i32 : i32 to index
    %c0_70 = arith.constant 0 : index
    %c0_71 = arith.constant 0 : index
    %238 = vector.load %arg1[%237, %c0_70, %c0_71] : memref<8x16x32xbf16, #tpu.memory_space<vmem>>, vector<1x16x32xbf16>
    %239 = vector.shape_cast %238 : vector<1x16x32xbf16> to vector<16x32xbf16>
    %cst_72 = arith.constant dense<0.000000e+00> : vector<16x128xf32>
    %240 = tpu.matmul %239, %0, %cst_72 {dimension_numbers = #tpu.dot_dimension_numbers<[1], [0], [0], [1], [0, 0, 1, 1], [], []>} : vector<16x32xbf16>, vector<32x128xbf16>, vector<16x128xf32> -> vector<16x128xf32>
    %241 = arith.truncf %217 : vector<16x32xf32> to vector<16x32xbf16>
    %cst_73 = arith.constant dense<0.000000e+00> : vector<16x128xf32>
    %242 = tpu.matmul %241, %1, %cst_73 {dimension_numbers = #tpu.dot_dimension_numbers<[1], [0], [0], [1], [0, 0, 1, 1], [], []>} : vector<16x32xbf16>, vector<32x128xbf16>, vector<16x128xf32> -> vector<16x128xf32>
    %243 = arith.addf %240, %242 : vector<16x128xf32>
    %244 = vector.broadcast %2 : vector<1x128xf32> to vector<16x128xf32>
    %245 = arith.addf %243, %244 : vector<16x128xf32>
    %246 = arith.negf %245 : vector<16x128xf32>
    %247 = math.exp %246 : vector<16x128xf32>
    %cst_74 = arith.constant 1.000000e+00 : f32
    %248 = vector.broadcast %cst_74 : f32 to vector<16x128xf32>
    %249 = arith.addf %248, %247 : vector<16x128xf32>
    %250 = arith.divf %248, %249 : vector<16x128xf32>
    %251 = vector.extract_strided_slice %250 {offsets = [0, 0], sizes = [16, 32], strides = [1, 1]} : vector<16x128xf32> to vector<16x32xf32>
    %252 = vector.extract_strided_slice %250 {offsets = [0, 32], sizes = [16, 32], strides = [1, 1]} : vector<16x128xf32> to vector<16x32xf32>
    %253 = vector.extract_strided_slice %250 {offsets = [0, 64], sizes = [16, 32], strides = [1, 1]} : vector<16x128xf32> to vector<16x32xf32>
    %254 = vector.extract_strided_slice %250 {offsets = [0, 96], sizes = [16, 32], strides = [1, 1]} : vector<16x128xf32> to vector<16x32xf32>
    %cst_75 = arith.constant 2.000000e+00 : f32
    %255 = vector.broadcast %cst_75 : f32 to vector<16x32xf32>
    %256 = arith.mulf %255, %254 : vector<16x32xf32>
    %cst_76 = arith.constant 1.000000e+00 : f32
    %257 = vector.broadcast %cst_76 : f32 to vector<16x32xf32>
    %258 = arith.subf %256, %257 : vector<16x32xf32>
    %259 = arith.mulf %252, %215 : vector<16x32xf32>
    %260 = arith.mulf %251, %258 : vector<16x32xf32>
    %261 = arith.addf %259, %260 : vector<16x32xf32>
    %262 = math.tanh %261 : vector<16x32xf32>
    %263 = arith.mulf %253, %262 : vector<16x32xf32>
    %264 = arith.truncf %263 : vector<16x32xf32> to vector<16x32xbf16>
    %cst_77 = arith.constant dense<0.000000e+00> : vector<16x128xf32>
    %265 = tpu.matmul %264, %3, %cst_77 {dimension_numbers = #tpu.dot_dimension_numbers<[1], [0], [0], [1], [0, 0, 1, 1], [], []>} : vector<16x32xbf16>, vector<32x128xbf16>, vector<16x128xf32> -> vector<16x128xf32>
    %266 = vector.broadcast %4 : vector<1x128xf32> to vector<16x128xf32>
    %267 = arith.addf %265, %266 : vector<16x128xf32>
    %cst_78 = arith.constant dense<0xFF800000> : vector<16xf32>
    %268 = vector.multi_reduction <maximumf>, %267, %cst_78 [1] : vector<16x128xf32> to vector<16xf32>
    %269 = vector.shape_cast %268 : vector<16xf32> to vector<16x1xf32>
    %270 = vector.broadcast %269 : vector<16x1xf32> to vector<16x128xf32>
    %271 = arith.subf %267, %270 : vector<16x128xf32>
    %272 = math.exp %271 : vector<16x128xf32>
    %cst_79 = arith.constant dense<0.000000e+00> : vector<16xf32>
    %273 = vector.multi_reduction <add>, %272, %cst_79 [1] : vector<16x128xf32> to vector<16xf32>
    %274 = vector.shape_cast %273 : vector<16xf32> to vector<16x1xf32>
    %275 = math.log %274 : vector<16x1xf32>
    %276 = vector.broadcast %275 : vector<16x1xf32> to vector<16x128xf32>
    %277 = arith.subf %271, %276 : vector<16x128xf32>
    %278 = arith.truncf %277 : vector<16x128xf32> to vector<16x128xbf16>
    %279 = arith.index_cast %c5_i32 : i32 to index
    %c0_80 = arith.constant 0 : index
    %c0_81 = arith.constant 0 : index
    %280 = vector.load %arg7[%279, %c0_80, %c0_81] : memref<8x16x128xbf16, #tpu.memory_space<vmem>>, vector<1x16x128xbf16>
    %281 = vector.shape_cast %280 : vector<1x16x128xbf16> to vector<16x128xbf16>
    %282 = vector.shape_cast %278 : vector<16x128xbf16> to vector<1x16x128xbf16>
    tpu.vector_store %arg7[%279, %c0_80, %c0_81], %282 {strides = array<i32>} : memref<8x16x128xbf16, #tpu.memory_space<vmem>>, vector<1x16x128xbf16>,
    %c6_i32 = arith.constant 6 : i32
    %283 = arith.index_cast %c6_i32 : i32 to index
    %c0_82 = arith.constant 0 : index
    %c0_83 = arith.constant 0 : index
    %284 = vector.load %arg1[%283, %c0_82, %c0_83] : memref<8x16x32xbf16, #tpu.memory_space<vmem>>, vector<1x16x32xbf16>
    %285 = vector.shape_cast %284 : vector<1x16x32xbf16> to vector<16x32xbf16>
    %cst_84 = arith.constant dense<0.000000e+00> : vector<16x128xf32>
    %286 = tpu.matmul %285, %0, %cst_84 {dimension_numbers = #tpu.dot_dimension_numbers<[1], [0], [0], [1], [0, 0, 1, 1], [], []>} : vector<16x32xbf16>, vector<32x128xbf16>, vector<16x128xf32> -> vector<16x128xf32>
    %287 = arith.truncf %263 : vector<16x32xf32> to vector<16x32xbf16>
    %cst_85 = arith.constant dense<0.000000e+00> : vector<16x128xf32>
    %288 = tpu.matmul %287, %1, %cst_85 {dimension_numbers = #tpu.dot_dimension_numbers<[1], [0], [0], [1], [0, 0, 1, 1], [], []>} : vector<16x32xbf16>, vector<32x128xbf16>, vector<16x128xf32> -> vector<16x128xf32>
    %289 = arith.addf %286, %288 : vector<16x128xf32>
    %290 = vector.broadcast %2 : vector<1x128xf32> to vector<16x128xf32>
    %291 = arith.addf %289, %290 : vector<16x128xf32>
    %292 = arith.negf %291 : vector<16x128xf32>
    %293 = math.exp %292 : vector<16x128xf32>
    %cst_86 = arith.constant 1.000000e+00 : f32
    %294 = vector.broadcast %cst_86 : f32 to vector<16x128xf32>
    %295 = arith.addf %294, %293 : vector<16x128xf32>
    %296 = arith.divf %294, %295 : vector<16x128xf32>
    %297 = vector.extract_strided_slice %296 {offsets = [0, 0], sizes = [16, 32], strides = [1, 1]} : vector<16x128xf32> to vector<16x32xf32>
    %298 = vector.extract_strided_slice %296 {offsets = [0, 32], sizes = [16, 32], strides = [1, 1]} : vector<16x128xf32> to vector<16x32xf32>
    %299 = vector.extract_strided_slice %296 {offsets = [0, 64], sizes = [16, 32], strides = [1, 1]} : vector<16x128xf32> to vector<16x32xf32>
    %300 = vector.extract_strided_slice %296 {offsets = [0, 96], sizes = [16, 32], strides = [1, 1]} : vector<16x128xf32> to vector<16x32xf32>
    %cst_87 = arith.constant 2.000000e+00 : f32
    %301 = vector.broadcast %cst_87 : f32 to vector<16x32xf32>
    %302 = arith.mulf %301, %300 : vector<16x32xf32>
    %cst_88 = arith.constant 1.000000e+00 : f32
    %303 = vector.broadcast %cst_88 : f32 to vector<16x32xf32>
    %304 = arith.subf %302, %303 : vector<16x32xf32>
    %305 = arith.mulf %298, %261 : vector<16x32xf32>
    %306 = arith.mulf %297, %304 : vector<16x32xf32>
    %307 = arith.addf %305, %306 : vector<16x32xf32>
    %308 = math.tanh %307 : vector<16x32xf32>
    %309 = arith.mulf %299, %308 : vector<16x32xf32>
    %310 = arith.truncf %309 : vector<16x32xf32> to vector<16x32xbf16>
    %cst_89 = arith.constant dense<0.000000e+00> : vector<16x128xf32>
    %311 = tpu.matmul %310, %3, %cst_89 {dimension_numbers = #tpu.dot_dimension_numbers<[1], [0], [0], [1], [0, 0, 1, 1], [], []>} : vector<16x32xbf16>, vector<32x128xbf16>, vector<16x128xf32> -> vector<16x128xf32>
    %312 = vector.broadcast %4 : vector<1x128xf32> to vector<16x128xf32>
    %313 = arith.addf %311, %312 : vector<16x128xf32>
    %cst_90 = arith.constant dense<0xFF800000> : vector<16xf32>
    %314 = vector.multi_reduction <maximumf>, %313, %cst_90 [1] : vector<16x128xf32> to vector<16xf32>
    %315 = vector.shape_cast %314 : vector<16xf32> to vector<16x1xf32>
    %316 = vector.broadcast %315 : vector<16x1xf32> to vector<16x128xf32>
    %317 = arith.subf %313, %316 : vector<16x128xf32>
    %318 = math.exp %317 : vector<16x128xf32>
    %cst_91 = arith.constant dense<0.000000e+00> : vector<16xf32>
    %319 = vector.multi_reduction <add>, %318, %cst_91 [1] : vector<16x128xf32> to vector<16xf32>
    %320 = vector.shape_cast %319 : vector<16xf32> to vector<16x1xf32>
    %321 = math.log %320 : vector<16x1xf32>
    %322 = vector.broadcast %321 : vector<16x1xf32> to vector<16x128xf32>
    %323 = arith.subf %317, %322 : vector<16x128xf32>
    %324 = arith.truncf %323 : vector<16x128xf32> to vector<16x128xbf16>
    %325 = arith.index_cast %c6_i32 : i32 to index
    %c0_92 = arith.constant 0 : index
    %c0_93 = arith.constant 0 : index
    %326 = vector.load %arg7[%325, %c0_92, %c0_93] : memref<8x16x128xbf16, #tpu.memory_space<vmem>>, vector<1x16x128xbf16>
    %327 = vector.shape_cast %326 : vector<1x16x128xbf16> to vector<16x128xbf16>
    %328 = vector.shape_cast %324 : vector<16x128xbf16> to vector<1x16x128xbf16>
    tpu.vector_store %arg7[%325, %c0_92, %c0_93], %328 {strides = array<i32>} : memref<8x16x128xbf16, #tpu.memory_space<vmem>>, vector<1x16x128xbf16>,
    %c7_i32 = arith.constant 7 : i32
    %329 = arith.index_cast %c7_i32 : i32 to index
    %c0_94 = arith.constant 0 : index
    %c0_95 = arith.constant 0 : index
    %330 = vector.load %arg1[%329, %c0_94, %c0_95] : memref<8x16x32xbf16, #tpu.memory_space<vmem>>, vector<1x16x32xbf16>
    %331 = vector.shape_cast %330 : vector<1x16x32xbf16> to vector<16x32xbf16>
    %cst_96 = arith.constant dense<0.000000e+00> : vector<16x128xf32>
    %332 = tpu.matmul %331, %0, %cst_96 {dimension_numbers = #tpu.dot_dimension_numbers<[1], [0], [0], [1], [0, 0, 1, 1], [], []>} : vector<16x32xbf16>, vector<32x128xbf16>, vector<16x128xf32> -> vector<16x128xf32>
    %333 = arith.truncf %309 : vector<16x32xf32> to vector<16x32xbf16>
    %cst_97 = arith.constant dense<0.000000e+00> : vector<16x128xf32>
    %334 = tpu.matmul %333, %1, %cst_97 {dimension_numbers = #tpu.dot_dimension_numbers<[1], [0], [0], [1], [0, 0, 1, 1], [], []>} : vector<16x32xbf16>, vector<32x128xbf16>, vector<16x128xf32> -> vector<16x128xf32>
    %335 = arith.addf %332, %334 : vector<16x128xf32>
    %336 = vector.broadcast %2 : vector<1x128xf32> to vector<16x128xf32>
    %337 = arith.addf %335, %336 : vector<16x128xf32>
    %338 = arith.negf %337 : vector<16x128xf32>
    %339 = math.exp %338 : vector<16x128xf32>
    %cst_98 = arith.constant 1.000000e+00 : f32
    %340 = vector.broadcast %cst_98 : f32 to vector<16x128xf32>
    %341 = arith.addf %340, %339 : vector<16x128xf32>
    %342 = arith.divf %340, %341 : vector<16x128xf32>
    %343 = vector.extract_strided_slice %342 {offsets = [0, 0], sizes = [16, 32], strides = [1, 1]} : vector<16x128xf32> to vector<16x32xf32>
    %344 = vector.extract_strided_slice %342 {offsets = [0, 32], sizes = [16, 32], strides = [1, 1]} : vector<16x128xf32> to vector<16x32xf32>
    %345 = vector.extract_strided_slice %342 {offsets = [0, 64], sizes = [16, 32], strides = [1, 1]} : vector<16x128xf32> to vector<16x32xf32>
    %346 = vector.extract_strided_slice %342 {offsets = [0, 96], sizes = [16, 32], strides = [1, 1]} : vector<16x128xf32> to vector<16x32xf32>
    %cst_99 = arith.constant 2.000000e+00 : f32
    %347 = vector.broadcast %cst_99 : f32 to vector<16x32xf32>
    %348 = arith.mulf %347, %346 : vector<16x32xf32>
    %cst_100 = arith.constant 1.000000e+00 : f32
    %349 = vector.broadcast %cst_100 : f32 to vector<16x32xf32>
    %350 = arith.subf %348, %349 : vector<16x32xf32>
    %351 = arith.mulf %344, %307 : vector<16x32xf32>
    %352 = arith.mulf %343, %350 : vector<16x32xf32>
    %353 = arith.addf %351, %352 : vector<16x32xf32>
    %354 = math.tanh %353 : vector<16x32xf32>
    %355 = arith.mulf %345, %354 : vector<16x32xf32>
    %356 = arith.truncf %355 : vector<16x32xf32> to vector<16x32xbf16>
    %cst_101 = arith.constant dense<0.000000e+00> : vector<16x128xf32>
    %357 = tpu.matmul %356, %3, %cst_101 {dimension_numbers = #tpu.dot_dimension_numbers<[1], [0], [0], [1], [0, 0, 1, 1], [], []>} : vector<16x32xbf16>, vector<32x128xbf16>, vector<16x128xf32> -> vector<16x128xf32>
    %358 = vector.broadcast %4 : vector<1x128xf32> to vector<16x128xf32>
    %359 = arith.addf %357, %358 : vector<16x128xf32>
    %cst_102 = arith.constant dense<0xFF800000> : vector<16xf32>
    %360 = vector.multi_reduction <maximumf>, %359, %cst_102 [1] : vector<16x128xf32> to vector<16xf32>
    %361 = vector.shape_cast %360 : vector<16xf32> to vector<16x1xf32>
    %362 = vector.broadcast %361 : vector<16x1xf32> to vector<16x128xf32>
    %363 = arith.subf %359, %362 : vector<16x128xf32>
    %364 = math.exp %363 : vector<16x128xf32>
    %cst_103 = arith.constant dense<0.000000e+00> : vector<16xf32>
    %365 = vector.multi_reduction <add>, %364, %cst_103 [1] : vector<16x128xf32> to vector<16xf32>
    %366 = vector.shape_cast %365 : vector<16xf32> to vector<16x1xf32>
    %367 = math.log %366 : vector<16x1xf32>
    %368 = vector.broadcast %367 : vector<16x1xf32> to vector<16x128xf32>
    %369 = arith.subf %363, %368 : vector<16x128xf32>
    %370 = arith.truncf %369 : vector<16x128xf32> to vector<16x128xbf16>
    %371 = arith.index_cast %c7_i32 : i32 to index
    %c0_104 = arith.constant 0 : index
    %c0_105 = arith.constant 0 : index
    %372 = vector.load %arg7[%371, %c0_104, %c0_105] : memref<8x16x128xbf16, #tpu.memory_space<vmem>>, vector<1x16x128xbf16>
    %373 = vector.shape_cast %372 : vector<1x16x128xbf16> to vector<16x128xbf16>
    %374 = vector.shape_cast %370 : vector<16x128xbf16> to vector<1x16x128xbf16>
    tpu.vector_store %arg7[%371, %c0_104, %c0_105], %374 {strides = array<i32>} : memref<8x16x128xbf16, #tpu.memory_space<vmem>>, vector<1x16x128xbf16>,
    %c8_i32 = arith.constant 8 : i32
    return
  }
  func.func @transform_0(%arg0: i32) -> (i32, i32, i32) {
    %c0_i32 = arith.constant 0 : i32
    %c0_i32_0 = arith.constant 0 : i32
    %c0_i32_1 = arith.constant 0 : i32
    return %c0_i32, %arg0, %c0_i32_0 : i32, i32, i32
  }
  func.func @transform_1(%arg0: i32) -> (i32, i32) {
    %c0_i32 = arith.constant 0 : i32
    %c0_i32_0 = arith.constant 0 : i32
    %c0_i32_1 = arith.constant 0 : i32
    return %c0_i32, %c0_i32_0 : i32, i32
  }
  func.func @transform_2(%arg0: i32) -> (i32, i32) {
    %c0_i32 = arith.constant 0 : i32
    %c0_i32_0 = arith.constant 0 : i32
    %c0_i32_1 = arith.constant 0 : i32
    return %c0_i32, %c0_i32_0 : i32, i32
  }
  func.func @transform_3(%arg0: i32) -> (i32, i32) {
    %c0_i32 = arith.constant 0 : i32
    %c0_i32_0 = arith.constant 0 : i32
    %c0_i32_1 = arith.constant 0 : i32
    return %c0_i32, %c0_i32_0 : i32, i32
  }
  func.func @transform_4(%arg0: i32) -> (i32, i32) {
    %c0_i32 = arith.constant 0 : i32
    %c0_i32_0 = arith.constant 0 : i32
    %c0_i32_1 = arith.constant 0 : i32
    return %c0_i32, %c0_i32_0 : i32, i32
  }
  func.func @transform_5(%arg0: i32) -> (i32, i32) {
    %c0_i32 = arith.constant 0 : i32
    %c0_i32_0 = arith.constant 0 : i32
    %c0_i32_1 = arith.constant 0 : i32
    return %c0_i32, %c0_i32_0 : i32, i32
  }
  func.func @transform_6(%arg0: i32) -> (i32, i32, i32) {
    %c0_i32 = arith.constant 0 : i32
    %c0_i32_0 = arith.constant 0 : i32
    %c0_i32_1 = arith.constant 0 : i32
    return %c0_i32, %arg0, %c0_i32_0 : i32, i32, i32
  }
}

</mosaic_0001>

<llo_original>
// kernel: tpu_custom_call.1
$region0: #{tpu_custom_call.1}
  #allocation0 [shape = 'u32[]', space=smem, size = 0x4, offset = 0x4, fixed_abs, tag = 'smem constant byte address 0x4 - core index']
  #allocation1 [shape = 'u32[144,128]{1,0:T(1,128)}', space=vmem, size = 0x12000, scoped, tag = 'internal scratch']
  %s0 = inlined_call_operand.hbm [shape: bf16[8,16,32], index: 0, kind: input, shape index: {}]
  %s1 = inlined_call_operand.hbm [shape: bf16[32,128], index: 1, kind: input, shape index: {}]
  %s2 = inlined_call_operand.hbm [shape: bf16[32,128], index: 2, kind: input, shape index: {}]
  %s3 = inlined_call_operand.vmem [shape: f32[1,128], index: 3, kind: input, shape index: {}]
  %s4 = inlined_call_operand.hbm [shape: bf16[32,128], index: 4, kind: input, shape index: {}]
  %s5 = inlined_call_operand.vmem [shape: f32[1,128], index: 5, kind: input, shape index: {}]
  %s6 = inlined_call_operand.hbm [shape: bf16[8,16,128], index: 6, kind: output, shape index: {}]
  %s7 = sld [smem:[#allocation0]]
  $region50: #{tpu_custom_call.1} parent=0
    _
  %s9 = ssub.s32 1, %s7
  %s10 = scalar_select 0, %s9, %s7
  $region1: #{tpu_custom_call.1} parent=0
    #allocation2 [shape = 'u8[32768]{0}', space=vmem, size = 0x8000, scoped, tag = 'input window, operand 0, single buffered']
    #allocation3 [shape = 's32[1]{0}', space=sflag, size = 0x4, scoped, tag = 'scoped memory for tpu_custom_call.1']
    #allocation4 [shape = 's32[1]{0}', space=sflag, size = 0x4, scoped, tag = 'scoped memory for tpu_custom_call.1']
    #allocation5 [shape = 'u8[8192]{0}', space=vmem, size = 0x2000, scoped, tag = 'input window, operand 1, single buffered']
    #allocation6 [shape = 's32[1]{0}', space=sflag, size = 0x4, scoped, tag = 'scoped memory for tpu_custom_call.1']
    #allocation7 [shape = 'u8[8192]{0}', space=vmem, size = 0x2000, scoped, tag = 'input window, operand 2, single buffered']
    #allocation8 [shape = 'u8[8192]{0}', space=vmem, size = 0x2000, scoped, tag = 'input window, operand 4, single buffered']
    #allocation9 [shape = 's32[1]{0}', space=sflag, size = 0x4, scoped, tag = 'scoped memory for tpu_custom_call.1']
    #allocation10 [shape = 'u8[32768]{0}', space=vmem, size = 0x8000, scoped, tag = 'output window, operand 0, single buffered']
    %11 = vsyncpa [#allocation3], 0
    %12 = vsyncpa [#allocation6], 0
    %13 = vsyncpa [#allocation9], 0
    %14 = vsyncpa [#allocation4], 0
    // Predicated region
    $region2: #{tpu_custom_call.1} parent=1 // pred_check
      _
    $region3: #{tpu_custom_call.1} parent=1 // pred_check_branch
      %16 = sbr.rel (0) target = $region5
    $region4: #{tpu_custom_call.1} parent=1 // pred_region
      %s18 = ssub.s32 1024, 1024
      %19 = vsyncadd [#allocation3], %s18
      %s20 = sshll.u32 [#allocation2], 4
      %s21 = int_to_ptr.vmem [resolvable:$true] %s20
      %26 = dma.hbm_to_vmem [thread:$0]  %s0, 1024, %s21, [#allocation3], 64, 64, 4
    $region5: #{tpu_custom_call.1} parent=1 // pred_fallthru
      _
    // Predicated region
    $region6: #{tpu_custom_call.1} parent=1 // pred_check
      _
    $region7: #{tpu_custom_call.1} parent=1 // pred_check_branch
      %28 = sbr.rel (0) target = $region9
    $region8: #{tpu_custom_call.1} parent=1 // pred_region
      %s30 = ssub.s32 256, 256
      %31 = vsyncadd [#allocation6], %s30
      %s32 = sshll.u32 [#allocation5], 4
      %s33 = int_to_ptr.vmem [resolvable:$true] %s32
      %38 = dma.hbm_to_vmem [thread:$0]  %s1, 256, %s33, [#allocation6], 64, 64, 4
    $region9: #{tpu_custom_call.1} parent=1 // pred_fallthru
      _
    // Predicated region
    $region10: #{tpu_custom_call.1} parent=1 // pred_check
      _
    $region11: #{tpu_custom_call.1} parent=1 // pred_check_branch
      %40 = sbr.rel (0) target = $region13
    $region12: #{tpu_custom_call.1} parent=1 // pred_region
      %s42 = ssub.s32 256, 256
      %43 = vsyncadd [#allocation6], %s42
      %s44 = sshll.u32 [#allocation7], 4
      %s45 = int_to_ptr.vmem [resolvable:$true] %s44
      %50 = dma.hbm_to_vmem [thread:$0]  %s2, 256, %s45, [#allocation6], 64, 64, 4
    $region13: #{tpu_custom_call.1} parent=1 // pred_fallthru
      _
    // Predicated region
    $region14: #{tpu_custom_call.1} parent=1 // pred_check
      _
    $region15: #{tpu_custom_call.1} parent=1 // pred_check_branch
      %52 = sbr.rel (0) target = $region17
    $region16: #{tpu_custom_call.1} parent=1 // pred_region
      _
    $region17: #{tpu_custom_call.1} parent=1 // pred_fallthru
      _
    // Predicated region
    $region18: #{tpu_custom_call.1} parent=1 // pred_check
      _
    $region19: #{tpu_custom_call.1} parent=1 // pred_check_branch
      %54 = sbr.rel (0) target = $region21
    $region20: #{tpu_custom_call.1} parent=1 // pred_region
      %s56 = ssub.s32 256, 256
      %57 = vsyncadd [#allocation9], %s56
      %s58 = sshll.u32 [#allocation8], 4
      %s59 = int_to_ptr.vmem [resolvable:$true] %s58
      %64 = dma.hbm_to_vmem [thread:$0]  %s4, 256, %s59, [#allocation9], 64, 64, 4
    $region21: #{tpu_custom_call.1} parent=1 // pred_fallthru
      _
    // Predicated region
    $region22: #{tpu_custom_call.1} parent=1 // pred_check
      _
    $region23: #{tpu_custom_call.1} parent=1 // pred_check_branch
      %66 = sbr.rel (0) target = $region25
    $region24: #{tpu_custom_call.1} parent=1 // pred_region
      _
    $region25: #{tpu_custom_call.1} parent=1 // pred_fallthru
      _
    // Predicated region
    $region26: #{tpu_custom_call.1} parent=1 // pred_check
      _
    $region27: #{tpu_custom_call.1} parent=1 // pred_check_branch
      %68 = sbr.rel (0) target = $region29
    $region28: #{tpu_custom_call.1} parent=1 // pred_region
      %69 = dma.done [#allocation3], 1024
    $region29: #{tpu_custom_call.1} parent=1 // pred_fallthru
      _
    // Predicated region
    $region30: #{tpu_custom_call.1} parent=1 // pred_check
      _
    $region31: #{tpu_custom_call.1} parent=1 // pred_check_branch
      %71 = sbr.rel (0) target = $region33
    $region32: #{tpu_custom_call.1} parent=1 // pred_region
      %72 = dma.done [#allocation6], 256
    $region33: #{tpu_custom_call.1} parent=1 // pred_fallthru
      _
    // Predicated region
    $region34: #{tpu_custom_call.1} parent=1 // pred_check
      _
    $region35: #{tpu_custom_call.1} parent=1 // pred_check_branch
      %74 = sbr.rel (0) target = $region37
    $region36: #{tpu_custom_call.1} parent=1 // pred_region
      %75 = dma.done [#allocation6], 256
    $region37: #{tpu_custom_call.1} parent=1 // pred_fallthru
      _
    // Predicated region
    $region38: #{tpu_custom_call.1} parent=1 // pred_check
      _
    $region39: #{tpu_custom_call.1} parent=1 // pred_check_branch
      %77 = sbr.rel (0) target = $region41
    $region40: #{tpu_custom_call.1} parent=1 // pred_region
      %78 = dma.done [#allocation9], 256
    $region41: #{tpu_custom_call.1} parent=1 // pred_fallthru
      _
    %v80 = vld [vmem:[#allocation5] sm:$0xf]
    %v81 = vld [vmem:[#allocation5 + $0x4] sm:$0xf]
    %v82 = vld [vmem:[#allocation5 + $0x8] sm:$0xf]
    %v83 = vld [vmem:[#allocation5 + $0xc] sm:$0xf]
    %v84 = vld [vmem:[#allocation7] sm:$0xf]
    %v85 = vld [vmem:[#allocation7 + $0x4] sm:$0xf]
    %v86 = vld [vmem:[#allocation7 + $0x8] sm:$0xf]
    %v87 = vld [vmem:[#allocation7 + $0xc] sm:$0xf]
    %v88 = vld [vmem:[%s3] sm:$0x1]
    %v89 = vld [vmem:[#allocation8] sm:$0xf]
    %v90 = vld [vmem:[#allocation8 + $0x4] sm:$0xf]
    %v91 = vld [vmem:[#allocation8 + $0x8] sm:$0xf]
    %v92 = vld [vmem:[#allocation8 + $0xc] sm:$0xf]
    %v93 = vld [vmem:[%s5] sm:$0x1]
    %v94 = vld [vmem:[#allocation2] sm:$0xf]
    %v95 = vld [vmem:[#allocation2 + $0x4] sm:$0xf]
    %v100 = vunpack.c.l.b16 %v84
    %v101 = vunpack.c.l.b16 %v85
    %v102 = vunpack.c.l.b16 %v86
    %v103 = vunpack.c.l.b16 %v87
    %v104 = vpack.c.b16 %v101, %v100
    %v105 = vpack.c.b16 %v103, %v102
    %vm108 = vcmask 261120
    %v110 = vsel %vm108, 0, 0
    %112 = vmatprep.subr.bf16.mxu0 0
    %113 = vmatpush1.bf16.msra.mxu0 %v104
    %114 = vmatprep.subr.bf16.mxu0 0
    %115 = vmatpush1.bf16.msra.mxu0 %v105
    %116 = vmatprep.subr.bf16.mxu0 0
    %117 = vmatpush1.bf16.msra.mxu0 0
    %118 = vmatprep.subr.bf16.mxu0 0
    %119 = vmatpush1.bf16.msra.mxu0 0
    %120 = vmatprep.subr.bf16.mxu0 0
    %121 = vmatpush1.bf16.msra.mxu0 0
    %122 = vmatprep.subr.bf16.mxu0 0
    %123 = vmatpush1.bf16.msra.mxu0 0
    %124 = vmatprep.subr.bf16.mxu0 0
    %125 = vmatpush1.bf16.msra.mxu0 0
    %126 = vmatprep.subr.bf16.mxu0 0
    %127 = vmatpush1.bf16.msra.mxu0 0
    %128 = vmatprep.subr.bf16.mxu0 0
    %129 = vmatpush1.bf16.msra.mxu0 0
    %130 = vmatprep.subr.bf16.mxu0 0
    %131 = vmatpush1.bf16.msra.mxu0 0
    %132 = vmatprep.subr.bf16.mxu0 0
    %133 = vmatpush1.bf16.msra.mxu0 0
    %134 = vmatprep.subr.bf16.mxu0 0
    %135 = vmatpush1.bf16.msra.mxu0 0
    %136 = vmatprep.subr.bf16.mxu0 0
    %137 = vmatpush1.bf16.msra.mxu0 0
    %138 = vmatprep.subr.bf16.mxu0 0
    %139 = vmatpush1.bf16.msra.mxu0 0
    %140 = vmatprep.subr.bf16.mxu0 0
    %141 = vmatpush1.bf16.msra.mxu0 0
    %142 = vmatprep.subr.bf16.mxu0 0
    %143 = vmatpush1.bf16.msra.mxu0 0
    %144 = vmatprep.mubr.bf16.mxu0 0
    %145 = vmatmul.mubr.bf16.gmra.mrb[0].mxu0 %v110
    %v146 = vpop.f32.mrb[0].mxu0
    %v147 = vadd.f32 0.0, %v146
    %v148 = vpop.f32.mrb[0].mxu0
    %v149 = vpop.f32.mrb[0].mxu0
    %v150 = vadd.f32 0.0, %v149
    %v151 = vpop.f32.mrb[0].mxu0
    %152 = vdwg.mxu0
    %v155 = vunpack.c.l.b16 %v94
    %v156 = vunpack.c.l.b16 %v95
    %v157 = vpack.c.b16 %v156, %v155
    %v162 = vunpack.c.l.b16 %v80
    %v163 = vunpack.c.l.b16 %v81
    %v164 = vunpack.c.l.b16 %v82
    %v165 = vunpack.c.l.b16 %v83
    %v166 = vpack.c.b16 %v163, %v162
    %v167 = vpack.c.b16 %v165, %v164
    %v171 = vsel %vm108, %v157, 0
    %173 = vmatprep.subr.bf16.mxu0 0
    %174 = vmatpush1.bf16.msra.mxu0 %v166
    %175 = vmatprep.subr.bf16.mxu0 0
    %176 = vmatpush1.bf16.msra.mxu0 %v167
    %177 = vmatprep.subr.bf16.mxu0 0
    %178 = vmatpush1.bf16.msra.mxu0 0
    %179 = vmatprep.subr.bf16.mxu0 0
    %180 = vmatpush1.bf16.msra.mxu0 0
    %181 = vmatprep.subr.bf16.mxu0 0
    %182 = vmatpush1.bf16.msra.mxu0 0
    %183 = vmatprep.subr.bf16.mxu0 0
    %184 = vmatpush1.bf16.msra.mxu0 0
    %185 = vmatprep.subr.bf16.mxu0 0
    %186 = vmatpush1.bf16.msra.mxu0 0
    %187 = vmatprep.subr.bf16.mxu0 0
    %188 = vmatpush1.bf16.msra.mxu0 0
    %189 = vmatprep.subr.bf16.mxu0 0
    %190 = vmatpush1.bf16.msra.mxu0 0
    %191 = vmatprep.subr.bf16.mxu0 0
    %192 = vmatpush1.bf16.msra.mxu0 0
    %193 = vmatprep.subr.bf16.mxu0 0
    %194 = vmatpush1.bf16.msra.mxu0 0
    %195 = vmatprep.subr.bf16.mxu0 0
    %196 = vmatpush1.bf16.msra.mxu0 0
    %197 = vmatprep.subr.bf16.mxu0 0
    %198 = vmatpush1.bf16.msra.mxu0 0
    %199 = vmatprep.subr.bf16.mxu0 0
    %200 = vmatpush1.bf16.msra.mxu0 0
    %201 = vmatprep.subr.bf16.mxu0 0
    %202 = vmatpush1.bf16.msra.mxu0 0
    %203 = vmatprep.subr.bf16.mxu0 0
    %204 = vmatpush1.bf16.msra.mxu0 0
    %205 = vmatprep.mubr.bf16.mxu0 0
    %206 = vmatmul.mubr.bf16.gmra.mrb[0].mxu0 %v171
    %v207 = vpop.f32.mrb[0].mxu0
    %v208 = vadd.f32 %v147, %v207
    %v209 = vpop.f32.mrb[0].mxu0
    %v210 = vpop.f32.mrb[0].mxu0
    %v211 = vadd.f32 %v150, %v210
    %v212 = vpop.f32.mrb[0].mxu0
    %213 = vdwg.mxu0
    %v215 = vlaneseq
    %v216 = vshrl.u32 %v215, 7
    %v217 = vsub.s32 0, %v216
    %v218 = vrot.slane %v88, %v217
    %v220 = vadd.f32 %v208, %v218
    %v221 = vadd.f32 %v211, %v218
    %v222 = vxor.u32 %v220, 2147483648
    %v223 = vxor.u32 %v221, 2147483648
    %v224 = vmul.f32 %v222, 1.442695
    %v225 = vpow.pop %v224
    %v226 = vmul.f32 %v223, 1.442695
    %v227 = vpow.pop %v226
    %v228 = vadd.f32 %v225, 1.0
    %v229 = vadd.f32 %v227, 1.0
    %v230 = vrcp.pop %v228
    %v231 = vmul.f32 1.0, %v230
    %v232 = vrcp.pop %v229
    %v233 = vmul.f32 1.0, %v232
    %v234 = vmul.f32 %v231, 2.0
    %v235 = vmul.f32 %v233, 2.0
    %v236 = vsub.f32 %v234, 1.0
    %v237 = vsub.f32 %v235, 1.0
    %v238 = vmul.f32 %v231, 0.0
    %v239 = vmul.f32 %v233, 0.0
    %242 = vrot.lane.b32.xlu0 %v236, 32
    %v243 = vpop.permute.xlu0 %242
    %244 = vrot.lane.b32.xlu0 %v237, 32
    %v245 = vpop.permute.xlu0 %244
    %v248 = vmul.f32 %v231, %v243
    %v249 = vmul.f32 %v233, %v245
    %252 = vrot.lane.b32.xlu0 %v248, 32
    %v253 = vpop.permute.xlu0 %252
    %254 = vrot.lane.b32.xlu0 %v249, 32
    %v255 = vpop.permute.xlu0 %254
    %v258 = vadd.f32 %v238, %v253
    %v259 = vadd.f32 %v239, %v255
    %v260 = vtanh.pop %v258
    %v261 = vtanh.pop %v259
    %264 = vrot.lane.b32.xlu0 %v260, 32
    %v265 = vpop.permute.xlu0 %264
    %266 = vrot.lane.b32.xlu0 %v261, 32
    %v267 = vpop.permute.xlu0 %266
    %v270 = vmul.f32 %v231, %v265
    %v271 = vmul.f32 %v233, %v267
    %v272 = vpack.c.bf16 %v271, %v270
    %v274 = vlaneseq
    %v275 = vshrl.u32 %v274, 7
    %v276 = vsub.s32 0, %v275
    %v277 = vrot.slane %v93, %v276
    %280 = vrot.lane.b32.xlu0 %v272, 64
    %v281 = vpop.permute.xlu0 %280
    %v286 = vunpack.c.l.b16 %v89
    %v287 = vunpack.c.l.b16 %v90
    %v288 = vunpack.c.l.b16 %v91
    %v289 = vunpack.c.l.b16 %v92
    %v290 = vpack.c.b16 %v287, %v286
    %v291 = vpack.c.b16 %v289, %v288
    %v295 = vsel %vm108, %v281, 0
    %297 = vmatprep.subr.bf16.mxu0 0
    %298 = vmatpush1.bf16.msra.mxu0 %v290
    %299 = vmatprep.subr.bf16.mxu0 0
    %300 = vmatpush1.bf16.msra.mxu0 %v291
    %301 = vmatprep.subr.bf16.mxu0 0
    %302 = vmatpush1.bf16.msra.mxu0 0
    %303 = vmatprep.subr.bf16.mxu0 0
    %304 = vmatpush1.bf16.msra.mxu0 0
    %305 = vmatprep.subr.bf16.mxu0 0
    %306 = vmatpush1.bf16.msra.mxu0 0
    %307 = vmatprep.subr.bf16.mxu0 0
    %308 = vmatpush1.bf16.msra.mxu0 0
    %309 = vmatprep.subr.bf16.mxu0 0
    %310 = vmatpush1.bf16.msra.mxu0 0
    %311 = vmatprep.subr.bf16.mxu0 0
    %312 = vmatpush1.bf16.msra.mxu0 0
    %313 = vmatprep.subr.bf16.mxu0 0
    %314 = vmatpush1.bf16.msra.mxu0 0
    %315 = vmatprep.subr.bf16.mxu0 0
    %316 = vmatpush1.bf16.msra.mxu0 0
    %317 = vmatprep.subr.bf16.mxu0 0
    %318 = vmatpush1.bf16.msra.mxu0 0
    %319 = vmatprep.subr.bf16.mxu0 0
    %320 = vmatpush1.bf16.msra.mxu0 0
    %321 = vmatprep.subr.bf16.mxu0 0
    %322 = vmatpush1.bf16.msra.mxu0 0
    %323 = vmatprep.subr.bf16.mxu0 0
    %324 = vmatpush1.bf16.msra.mxu0 0
    %325 = vmatprep.subr.bf16.mxu0 0
    %326 = vmatpush1.bf16.msra.mxu0 0
    %327 = vmatprep.subr.bf16.mxu0 0
    %328 = vmatpush1.bf16.msra.mxu0 0
    %329 = vmatprep.mubr.bf16.mxu0 0
    %330 = vmatmul.mubr.bf16.gmra.mrb[0].mxu0 %v295
    %v331 = vpop.f32.mrb[0].mxu0
    %v332 = vadd.f32 %v277, %v331
    %v333 = vpop.f32.mrb[0].mxu0
    %v334 = vpop.f32.mrb[0].mxu0
    %v335 = vadd.f32 %v277, %v334
    %v336 = vpop.f32.mrb[0].mxu0
    %337 = vdwg.mxu0
    %338 = vmax.xlane.f32.xlu0 %v332
    %v339 = vpop.xlane.xlu0 %338
    %340 = vmax.xlane.f32.xlu0 %v335
    %v341 = vpop.xlane.xlu0 %340
    %v342 = vsub.f32 %v332, %v339
    %v343 = vsub.f32 %v335, %v341
    %v344 = vmul.f32 %v342, 1.442695
    %v345 = vpow.pop %v344
    %v346 = vmul.f32 %v343, 1.442695
    %v347 = vpow.pop %v346
    %348 = vadd.xlane.f32.xlu0 %v345
    %v349 = vpop.xlane.xlu0 %348
    %350 = vadd.xlane.f32.xlu0 %v347
    %v351 = vpop.xlane.xlu0 %350
    %v352 = vlog2.pop %v349
    %v353 = vmul.f32 %v352, 0.6931472
    %v354 = vlog2.pop %v351
    %v355 = vmul.f32 %v354, 0.6931472
    %v356 = vsub.f32 %v342, %v353
    %v357 = vsub.f32 %v343, %v355
    %v358 = vpack.c.bf16 %v357, %v356
    %v360 = vunpack.c.l.b16 %v358
    %v361 = vunpack.c.h.b16 %v358
    %v362 = vpack.c.b16 %v360, %v360
    %v363 = vpack.c.b16 %v361, %v361
    %366 = vst [vmem:[#allocation10] sm:$0xf] %v362
    %367 = vst [vmem:[#allocation10 + $0x4] sm:$0xf] %v363
    %s368 = scalar_lea.vmem [#allocation2], 8
    %v369 = vld [vmem:[%s368] sm:$0xf]
    %v370 = vld [vmem:[%s368 + $0x4] sm:$0xf]
    %371 = vmatprep.subr.bf16.mxu0 0
    %372 = vmatpush1.bf16.msra.mxu0 %v104
    %373 = vmatprep.subr.bf16.mxu0 0
    %374 = vmatpush1.bf16.msra.mxu0 %v105
    %375 = vmatprep.subr.bf16.mxu0 0
    %376 = vmatpush1.bf16.msra.mxu0 0
    %377 = vmatprep.subr.bf16.mxu0 0
    %378 = vmatpush1.bf16.msra.mxu0 0
    %379 = vmatprep.subr.bf16.mxu0 0
    %380 = vmatpush1.bf16.msra.mxu0 0
    %381 = vmatprep.subr.bf16.mxu0 0
    %382 = vmatpush1.bf16.msra.mxu0 0
    %383 = vmatprep.subr.bf16.mxu0 0
    %384 = vmatpush1.bf16.msra.mxu0 0
    %385 = vmatprep.subr.bf16.mxu0 0
    %386 = vmatpush1.bf16.msra.mxu0 0
    %387 = vmatprep.subr.bf16.mxu0 0
    %388 = vmatpush1.bf16.msra.mxu0 0
    %389 = vmatprep.subr.bf16.mxu0 0
    %390 = vmatpush1.bf16.msra.mxu0 0
    %391 = vmatprep.subr.bf16.mxu0 0
    %392 = vmatpush1.bf16.msra.mxu0 0
    %393 = vmatprep.subr.bf16.mxu0 0
    %394 = vmatpush1.bf16.msra.mxu0 0
    %395 = vmatprep.subr.bf16.mxu0 0
    %396 = vmatpush1.bf16.msra.mxu0 0
    %397 = vmatprep.subr.bf16.mxu0 0
    %398 = vmatpush1.bf16.msra.mxu0 0
    %399 = vmatprep.subr.bf16.mxu0 0
    %400 = vmatpush1.bf16.msra.mxu0 0
    %401 = vmatprep.subr.bf16.mxu0 0
    %402 = vmatpush1.bf16.msra.mxu0 0
    %403 = vmatprep.mubr.bf16.mxu0 0
    %404 = vmatmul.mubr.bf16.gmra.mrb[0].mxu0 %v295
    %v405 = vpop.f32.mrb[0].mxu0
    %v406 = vadd.f32 0.0, %v405
    %v407 = vpop.f32.mrb[0].mxu0
    %v408 = vpop.f32.mrb[0].mxu0
    %v409 = vadd.f32 0.0, %v408
    %v410 = vpop.f32.mrb[0].mxu0
    %411 = vdwg.mxu0
    %v414 = vunpack.c.l.b16 %v369
    %v415 = vunpack.c.l.b16 %v370
    %v416 = vpack.c.b16 %v415, %v414
    %v418 = vsel %vm108, %v416, 0
    %420 = vmatprep.subr.bf16.mxu0 0
    %421 = vmatpush1.bf16.msra.mxu0 %v166
    %422 = vmatprep.subr.bf16.mxu0 0
    %423 = vmatpush1.bf16.msra.mxu0 %v167
    %424 = vmatprep.subr.bf16.mxu0 0
    %425 = vmatpush1.bf16.msra.mxu0 0
    %426 = vmatprep.subr.bf16.mxu0 0
    %427 = vmatpush1.bf16.msra.mxu0 0
    %428 = vmatprep.subr.bf16.mxu0 0
    %429 = vmatpush1.bf16.msra.mxu0 0
    %430 = vmatprep.subr.bf16.mxu0 0
    %431 = vmatpush1.bf16.msra.mxu0 0
    %432 = vmatprep.subr.bf16.mxu0 0
    %433 = vmatpush1.bf16.msra.mxu0 0
    %434 = vmatprep.subr.bf16.mxu0 0
    %435 = vmatpush1.bf16.msra.mxu0 0
    %436 = vmatprep.subr.bf16.mxu0 0
    %437 = vmatpush1.bf16.msra.mxu0 0
    %438 = vmatprep.subr.bf16.mxu0 0
    %439 = vmatpush1.bf16.msra.mxu0 0
    %440 = vmatprep.subr.bf16.mxu0 0
    %441 = vmatpush1.bf16.msra.mxu0 0
    %442 = vmatprep.subr.bf16.mxu0 0
    %443 = vmatpush1.bf16.msra.mxu0 0
    %444 = vmatprep.subr.bf16.mxu0 0
    %445 = vmatpush1.bf16.msra.mxu0 0
    %446 = vmatprep.subr.bf16.mxu0 0
    %447 = vmatpush1.bf16.msra.mxu0 0
    %448 = vmatprep.subr.bf16.mxu0 0
    %449 = vmatpush1.bf16.msra.mxu0 0
    %450 = vmatprep.subr.bf16.mxu0 0
    %451 = vmatpush1.bf16.msra.mxu0 0
    %452 = vmatprep.mubr.bf16.mxu0 0
    %453 = vmatmul.mubr.bf16.gmra.mrb[0].mxu0 %v418
    %v454 = vpop.f32.mrb[0].mxu0
    %v455 = vadd.f32 %v406, %v454
    %v456 = vpop.f32.mrb[0].mxu0
    %v457 = vpop.f32.mrb[0].mxu0
    %v458 = vadd.f32 %v409, %v457
    %v459 = vpop.f32.mrb[0].mxu0
    %460 = vdwg.mxu0
    %v461 = vadd.f32 %v455, %v218
    %v462 = vadd.f32 %v458, %v218
    %v463 = vxor.u32 %v461, 2147483648
    %v464 = vxor.u32 %v462, 2147483648
    %v465 = vmul.f32 %v463, 1.442695
    %v466 = vpow.pop %v465
    %v467 = vmul.f32 %v464, 1.442695
    %v468 = vpow.pop %v467
    %v469 = vadd.f32 %v466, 1.0
    %v470 = vadd.f32 %v468, 1.0
    %v471 = vrcp.pop %v469
    %v472 = vmul.f32 1.0, %v471
    %v473 = vrcp.pop %v470
    %v474 = vmul.f32 1.0, %v473
    %v475 = vmul.f32 %v472, 2.0
    %v476 = vmul.f32 %v474, 2.0
    %v477 = vsub.f32 %v475, 1.0
    %v478 = vsub.f32 %v476, 1.0
    %v479 = vmul.f32 %v472, %v258
    %v480 = vmul.f32 %v474, %v259
    %483 = vrot.lane.b32.xlu0 %v477, 32
    %v484 = vpop.permute.xlu0 %483
    %485 = vrot.lane.b32.xlu0 %v478, 32
    %v486 = vpop.permute.xlu0 %485
    %v489 = vmul.f32 %v472, %v484
    %v490 = vmul.f32 %v474, %v486
    %493 = vrot.lane.b32.xlu0 %v489, 32
    %v494 = vpop.permute.xlu0 %493
    %495 = vrot.lane.b32.xlu0 %v490, 32
    %v496 = vpop.permute.xlu0 %495
    %v499 = vadd.f32 %v479, %v494
    %v500 = vadd.f32 %v480, %v496
    %v501 = vtanh.pop %v499
    %v502 = vtanh.pop %v500
    %505 = vrot.lane.b32.xlu0 %v501, 32
    %v506 = vpop.permute.xlu0 %505
    %507 = vrot.lane.b32.xlu0 %v502, 32
    %v508 = vpop.permute.xlu0 %507
    %v511 = vmul.f32 %v472, %v506
    %v512 = vmul.f32 %v474, %v508
    %v513 = vpack.c.bf16 %v512, %v511
    %515 = vrot.lane.b32.xlu0 %v513, 64
    %v516 = vpop.permute.xlu0 %515
    %v518 = vsel %vm108, %v516, 0
    %520 = vmatprep.subr.bf16.mxu0 0
    %521 = vmatpush1.bf16.msra.mxu0 %v290
    %522 = vmatprep.subr.bf16.mxu0 0
    %523 = vmatpush1.bf16.msra.mxu0 %v291
    %524 = vmatprep.subr.bf16.mxu0 0
    %525 = vmatpush1.bf16.msra.mxu0 0
    %526 = vmatprep.subr.bf16.mxu0 0
    %527 = vmatpush1.bf16.msra.mxu0 0
    %528 = vmatprep.subr.bf16.mxu0 0
    %529 = vmatpush1.bf16.msra.mxu0 0
    %530 = vmatprep.subr.bf16.mxu0 0
    %531 = vmatpush1.bf16.msra.mxu0 0
    %532 = vmatprep.subr.bf16.mxu0 0
    %533 = vmatpush1.bf16.msra.mxu0 0
    %534 = vmatprep.subr.bf16.mxu0 0
    %535 = vmatpush1.bf16.msra.mxu0 0
    %536 = vmatprep.subr.bf16.mxu0 0
    %537 = vmatpush1.bf16.msra.mxu0 0
    %538 = vmatprep.subr.bf16.mxu0 0
    %539 = vmatpush1.bf16.msra.mxu0 0
    %540 = vmatprep.subr.bf16.mxu0 0
    %541 = vmatpush1.bf16.msra.mxu0 0
    %542 = vmatprep.subr.bf16.mxu0 0
    %543 = vmatpush1.bf16.msra.mxu0 0
    %544 = vmatprep.subr.bf16.mxu0 0
    %545 = vmatpush1.bf16.msra.mxu0 0
    %546 = vmatprep.subr.bf16.mxu0 0
    %547 = vmatpush1.bf16.msra.mxu0 0
    %548 = vmatprep.subr.bf16.mxu0 0
    %549 = vmatpush1.bf16.msra.mxu0 0
    %550 = vmatprep.subr.bf16.mxu0 0
    %551 = vmatpush1.bf16.msra.mxu0 0
    %552 = vmatprep.mubr.bf16.mxu0 0
    %553 = vmatmul.mubr.bf16.gmra.mrb[0].mxu0 %v518
    %v554 = vpop.f32.mrb[0].mxu0
    %v555 = vadd.f32 %v277, %v554
    %v556 = vpop.f32.mrb[0].mxu0
    %v557 = vpop.f32.mrb[0].mxu0
    %v558 = vadd.f32 %v277, %v557
    %v559 = vpop.f32.mrb[0].mxu0
    %560 = vdwg.mxu0
    %561 = vmax.xlane.f32.xlu0 %v555
    %v562 = vpop.xlane.xlu0 %561
    %563 = vmax.xlane.f32.xlu0 %v558
    %v564 = vpop.xlane.xlu0 %563
    %v565 = vsub.f32 %v555, %v562
    %v566 = vsub.f32 %v558, %v564
    %v567 = vmul.f32 %v565, 1.442695
    %v568 = vpow.pop %v567
    %v569 = vmul.f32 %v566, 1.442695
    %v570 = vpow.pop %v569
    %571 = vadd.xlane.f32.xlu0 %v568
    %v572 = vpop.xlane.xlu0 %571
    %573 = vadd.xlane.f32.xlu0 %v570
    %v574 = vpop.xlane.xlu0 %573
    %v575 = vlog2.pop %v572
    %v576 = vmul.f32 %v575, 0.6931472
    %v577 = vlog2.pop %v574
    %v578 = vmul.f32 %v577, 0.6931472
    %v579 = vsub.f32 %v565, %v576
    %v580 = vsub.f32 %v566, %v578
    %v581 = vpack.c.bf16 %v580, %v579
    %v583 = vunpack.c.l.b16 %v581
    %v584 = vunpack.c.h.b16 %v581
    %v585 = vpack.c.b16 %v583, %v583
    %v586 = vpack.c.b16 %v584, %v584
    %s589 = scalar_lea.vmem [#allocation10], 8
    %590 = vst [vmem:[%s589] sm:$0xf] %v585
    %591 = vst [vmem:[%s589 + $0x4] sm:$0xf] %v586
    %s592 = scalar_lea.vmem [#allocation2], 16
    %v593 = vld [vmem:[%s592] sm:$0xf]
    %v594 = vld [vmem:[%s592 + $0x4] sm:$0xf]
    %595 = vmatprep.subr.bf16.mxu0 0
    %596 = vmatpush1.bf16.msra.mxu0 %v104
    %597 = vmatprep.subr.bf16.mxu0 0
    %598 = vmatpush1.bf16.msra.mxu0 %v105
    %599 = vmatprep.subr.bf16.mxu0 0
    %600 = vmatpush1.bf16.msra.mxu0 0
    %601 = vmatprep.subr.bf16.mxu0 0
    %602 = vmatpush1.bf16.msra.mxu0 0
    %603 = vmatprep.subr.bf16.mxu0 0
    %604 = vmatpush1.bf16.msra.mxu0 0
    %605 = vmatprep.subr.bf16.mxu0 0
    %606 = vmatpush1.bf16.msra.mxu0 0
    %607 = vmatprep.subr.bf16.mxu0 0
    %608 = vmatpush1.bf16.msra.mxu0 0
    %609 = vmatprep.subr.bf16.mxu0 0
    %610 = vmatpush1.bf16.msra.mxu0 0
    %611 = vmatprep.subr.bf16.mxu0 0
    %612 = vmatpush1.bf16.msra.mxu0 0
    %613 = vmatprep.subr.bf16.mxu0 0
    %614 = vmatpush1.bf16.msra.mxu0 0
    %615 = vmatprep.subr.bf16.mxu0 0
    %616 = vmatpush1.bf16.msra.mxu0 0
    %617 = vmatprep.subr.bf16.mxu0 0
    %618 = vmatpush1.bf16.msra.mxu0 0
    %619 = vmatprep.subr.bf16.mxu0 0
    %620 = vmatpush1.bf16.msra.mxu0 0
    %621 = vmatprep.subr.bf16.mxu0 0
    %622 = vmatpush1.bf16.msra.mxu0 0
    %623 = vmatprep.subr.bf16.mxu0 0
    %624 = vmatpush1.bf16.msra.mxu0 0
    %625 = vmatprep.subr.bf16.mxu0 0
    %626 = vmatpush1.bf16.msra.mxu0 0
    %627 = vmatprep.mubr.bf16.mxu0 0
    %628 = vmatmul.mubr.bf16.gmra.mrb[0].mxu0 %v518
    %v629 = vpop.f32.mrb[0].mxu0
    %v630 = vadd.f32 0.0, %v629
    %v631 = vpop.f32.mrb[0].mxu0
    %v632 = vpop.f32.mrb[0].mxu0
    %v633 = vadd.f32 0.0, %v632
    %v634 = vpop.f32.mrb[0].mxu0
    %635 = vdwg.mxu0
    %v638 = vunpack.c.l.b16 %v593
    %v639 = vunpack.c.l.b16 %v594
    %v640 = vpack.c.b16 %v639, %v638
    %v642 = vsel %vm108, %v640, 0
    %644 = vmatprep.subr.bf16.mxu0 0
    %645 = vmatpush1.bf16.msra.mxu0 %v166
    %646 = vmatprep.subr.bf16.mxu0 0
    %647 = vmatpush1.bf16.msra.mxu0 %v167
    %648 = vmatprep.subr.bf16.mxu0 0
    %649 = vmatpush1.bf16.msra.mxu0 0
    %650 = vmatprep.subr.bf16.mxu0 0
    %651 = vmatpush1.bf16.msra.mxu0 0
    %652 = vmatprep.subr.bf16.mxu0 0
    %653 = vmatpush1.bf16.msra.mxu0 0
    %654 = vmatprep.subr.bf16.mxu0 0
    %655 = vmatpush1.bf16.msra.mxu0 0
    %656 = vmatprep.subr.bf16.mxu0 0
    %657 = vmatpush1.bf16.msra.mxu0 0
    %658 = vmatprep.subr.bf16.mxu0 0
    %659 = vmatpush1.bf16.msra.mxu0 0
    %660 = vmatprep.subr.bf16.mxu0 0
    %661 = vmatpush1.bf16.msra.mxu0 0
    %662 = vmatprep.subr.bf16.mxu0 0
    %663 = vmatpush1.bf16.msra.mxu0 0
    %664 = vmatprep.subr.bf16.mxu0 0
    %665 = vmatpush1.bf16.msra.mxu0 0
    %666 = vmatprep.subr.bf16.mxu0 0
    %667 = vmatpush1.bf16.msra.mxu0 0
    %668 = vmatprep.subr.bf16.mxu0 0
    %669 = vmatpush1.bf16.msra.mxu0 0
    %670 = vmatprep.subr.bf16.mxu0 0
    %671 = vmatpush1.bf16.msra.mxu0 0
    %672 = vmatprep.subr.bf16.mxu0 0
    %673 = vmatpush1.bf16.msra.mxu0 0
    %674 = vmatprep.subr.bf16.mxu0 0
    %675 = vmatpush1.bf16.msra.mxu0 0
    %676 = vmatprep.mubr.bf16.mxu0 0
    %677 = vmatmul.mubr.bf16.gmra.mrb[0].mxu0 %v642
    %v678 = vpop.f32.mrb[0].mxu0
    %v679 = vadd.f32 %v630, %v678
    %v680 = vpop.f32.mrb[0].mxu0
    %v681 = vpop.f32.mrb[0].mxu0
    %v682 = vadd.f32 %v633, %v681
    %v683 = vpop.f32.mrb[0].mxu0
    %684 = vdwg.mxu0
    %v685 = vadd.f32 %v679, %v218
    %v686 = vadd.f32 %v682, %v218
    %v687 = vxor.u32 %v685, 2147483648
    %v688 = vxor.u32 %v686, 2147483648
    %v689 = vmul.f32 %v687, 1.442695
    %v690 = vpow.pop %v689
    %v691 = vmul.f32 %v688, 1.442695
    %v692 = vpow.pop %v691
    %v693 = vadd.f32 %v690, 1.0
    %v694 = vadd.f32 %v692, 1.0
    %v695 = vrcp.pop %v693
    %v696 = vmul.f32 1.0, %v695
    %v697 = vrcp.pop %v694
    %v698 = vmul.f32 1.0, %v697
    %v699 = vmul.f32 %v696, 2.0
    %v700 = vmul.f32 %v698, 2.0
    %v701 = vsub.f32 %v699, 1.0
    %v702 = vsub.f32 %v700, 1.0
    %v703 = vmul.f32 %v696, %v499
    %v704 = vmul.f32 %v698, %v500
    %707 = vrot.lane.b32.xlu0 %v701, 32
    %v708 = vpop.permute.xlu0 %707
    %709 = vrot.lane.b32.xlu0 %v702, 32
    %v710 = vpop.permute.xlu0 %709
    %v713 = vmul.f32 %v696, %v708
    %v714 = vmul.f32 %v698, %v710
    %717 = vrot.lane.b32.xlu0 %v713, 32
    %v718 = vpop.permute.xlu0 %717
    %719 = vrot.lane.b32.xlu0 %v714, 32
    %v720 = vpop.permute.xlu0 %719
    %v723 = vadd.f32 %v703, %v718
    %v724 = vadd.f32 %v704, %v720
    %v725 = vtanh.pop %v723
    %v726 = vtanh.pop %v724
    %729 = vrot.lane.b32.xlu0 %v725, 32
    %v730 = vpop.permute.xlu0 %729
    %731 = vrot.lane.b32.xlu0 %v726, 32
    %v732 = vpop.permute.xlu0 %731
    %v735 = vmul.f32 %v696, %v730
    %v736 = vmul.f32 %v698, %v732
    %v737 = vpack.c.bf16 %v736, %v735
    %739 = vrot.lane.b32.xlu0 %v737, 64
    %v740 = vpop.permute.xlu0 %739
    %v742 = vsel %vm108, %v740, 0
    %744 = vmatprep.subr.bf16.mxu0 0
    %745 = vmatpush1.bf16.msra.mxu0 %v290
    %746 = vmatprep.subr.bf16.mxu0 0
    %747 = vmatpush1.bf16.msra.mxu0 %v291
    %748 = vmatprep.subr.bf16.mxu0 0
    %749 = vmatpush1.bf16.msra.mxu0 0
    %750 = vmatprep.subr.bf16.mxu0 0
    %751 = vmatpush1.bf16.msra.mxu0 0
    %752 = vmatprep.subr.bf16.mxu0 0
    %753 = vmatpush1.bf16.msra.mxu0 0
    %754 = vmatprep.subr.bf16.mxu0 0
    %755 = vmatpush1.bf16.msra.mxu0 0
    %756 = vmatprep.subr.bf16.mxu0 0
    %757 = vmatpush1.bf16.msra.mxu0 0
    %758 = vmatprep.subr.bf16.mxu0 0
    %759 = vmatpush1.bf16.msra.mxu0 0
    %760 = vmatprep.subr.bf16.mxu0 0
    %761 = vmatpush1.bf16.msra.mxu0 0
    %762 = vmatprep.subr.bf16.mxu0 0
    %763 = vmatpush1.bf16.msra.mxu0 0
    %764 = vmatprep.subr.bf16.mxu0 0
    %765 = vmatpush1.bf16.msra.mxu0 0
    %766 = vmatprep.subr.bf16.mxu0 0
    %767 = vmatpush1.bf16.msra.mxu0 0
    %768 = vmatprep.subr.bf16.mxu0 0
    %769 = vmatpush1.bf16.msra.mxu0 0
    %770 = vmatprep.subr.bf16.mxu0 0
    %771 = vmatpush1.bf16.msra.mxu0 0
    %772 = vmatprep.subr.bf16.mxu0 0
    %773 = vmatpush1.bf16.msra.mxu0 0
    %774 = vmatprep.subr.bf16.mxu0 0
    %775 = vmatpush1.bf16.msra.mxu0 0
    %776 = vmatprep.mubr.bf16.mxu0 0
    %777 = vmatmul.mubr.bf16.gmra.mrb[0].mxu0 %v742
    %v778 = vpop.f32.mrb[0].mxu0
    %v779 = vadd.f32 %v277, %v778
    %v780 = vpop.f32.mrb[0].mxu0
    %v781 = vpop.f32.mrb[0].mxu0
    %v782 = vadd.f32 %v277, %v781
    %v783 = vpop.f32.mrb[0].mxu0
    %784 = vdwg.mxu0
    %785 = vmax.xlane.f32.xlu0 %v779
    %v786 = vpop.xlane.xlu0 %785
    %787 = vmax.xlane.f32.xlu0 %v782
    %v788 = vpop.xlane.xlu0 %787
    %v789 = vsub.f32 %v779, %v786
    %v790 = vsub.f32 %v782, %v788
    %v791 = vmul.f32 %v789, 1.442695
    %v792 = vpow.pop %v791
    %v793 = vmul.f32 %v790, 1.442695
    %v794 = vpow.pop %v793
    %795 = vadd.xlane.f32.xlu0 %v792
    %v796 = vpop.xlane.xlu0 %795
    %797 = vadd.xlane.f32.xlu0 %v794
    %v798 = vpop.xlane.xlu0 %797
    %v799 = vlog2.pop %v796
    %v800 = vmul.f32 %v799, 0.6931472
    %v801 = vlog2.pop %v798
    %v802 = vmul.f32 %v801, 0.6931472
    %v803 = vsub.f32 %v789, %v800
    %v804 = vsub.f32 %v790, %v802
    %v805 = vpack.c.bf16 %v804, %v803
    %v807 = vunpack.c.l.b16 %v805
    %v808 = vunpack.c.h.b16 %v805
    %v809 = vpack.c.b16 %v807, %v807
    %v810 = vpack.c.b16 %v808, %v808
    %s813 = scalar_lea.vmem [#allocation10], 16
    %814 = vst [vmem:[%s813] sm:$0xf] %v809
    %815 = vst [vmem:[%s813 + $0x4] sm:$0xf] %v810
    %s816 = scalar_lea.vmem [#allocation2], 24
    %v817 = vld [vmem:[%s816] sm:$0xf]
    %v818 = vld [vmem:[%s816 + $0x4] sm:$0xf]
    %819 = vmatprep.subr.bf16.mxu0 0
    %820 = vmatpush1.bf16.msra.mxu0 %v104
    %821 = vmatprep.subr.bf16.mxu0 0
    %822 = vmatpush1.bf16.msra.mxu0 %v105
    %823 = vmatprep.subr.bf16.mxu0 0
    %824 = vmatpush1.bf16.msra.mxu0 0
    %825 = vmatprep.subr.bf16.mxu0 0
    %826 = vmatpush1.bf16.msra.mxu0 0
    %827 = vmatprep.subr.bf16.mxu0 0
    %828 = vmatpush1.bf16.msra.mxu0 0
    %829 = vmatprep.subr.bf16.mxu0 0
    %830 = vmatpush1.bf16.msra.mxu0 0
    %831 = vmatprep.subr.bf16.mxu0 0
    %832 = vmatpush1.bf16.msra.mxu0 0
    %833 = vmatprep.subr.bf16.mxu0 0
    %834 = vmatpush1.bf16.msra.mxu0 0
    %835 = vmatprep.subr.bf16.mxu0 0
    %836 = vmatpush1.bf16.msra.mxu0 0
    %837 = vmatprep.subr.bf16.mxu0 0
    %838 = vmatpush1.bf16.msra.mxu0 0
    %839 = vmatprep.subr.bf16.mxu0 0
    %840 = vmatpush1.bf16.msra.mxu0 0
    %841 = vmatprep.subr.bf16.mxu0 0
    %842 = vmatpush1.bf16.msra.mxu0 0
    %843 = vmatprep.subr.bf16.mxu0 0
    %844 = vmatpush1.bf16.msra.mxu0 0
    %845 = vmatprep.subr.bf16.mxu0 0
    %846 = vmatpush1.bf16.msra.mxu0 0
    %847 = vmatprep.subr.bf16.mxu0 0
    %848 = vmatpush1.bf16.msra.mxu0 0
    %849 = vmatprep.subr.bf16.mxu0 0
    %850 = vmatpush1.bf16.msra.mxu0 0
    %851 = vmatprep.mubr.bf16.mxu0 0
    %852 = vmatmul.mubr.bf16.gmra.mrb[0].mxu0 %v742
    %v853 = vpop.f32.mrb[0].mxu0
    %v854 = vadd.f32 0.0, %v853
    %v855 = vpop.f32.mrb[0].mxu0
    %v856 = vpop.f32.mrb[0].mxu0
    %v857 = vadd.f32 0.0, %v856
    %v858 = vpop.f32.mrb[0].mxu0
    %859 = vdwg.mxu0
    %v862 = vunpack.c.l.b16 %v817
    %v863 = vunpack.c.l.b16 %v818
    %v864 = vpack.c.b16 %v863, %v862
    %v866 = vsel %vm108, %v864, 0
    %868 = vmatprep.subr.bf16.mxu0 0
    %869 = vmatpush1.bf16.msra.mxu0 %v166
    %870 = vmatprep.subr.bf16.mxu0 0
    %871 = vmatpush1.bf16.msra.mxu0 %v167
    %872 = vmatprep.subr.bf16.mxu0 0
    %873 = vmatpush1.bf16.msra.mxu0 0
    %874 = vmatprep.subr.bf16.mxu0 0
    %875 = vmatpush1.bf16.msra.mxu0 0
    %876 = vmatprep.subr.bf16.mxu0 0
    %877 = vmatpush1.bf16.msra.mxu0 0
    %878 = vmatprep.subr.bf16.mxu0 0
    %879 = vmatpush1.bf16.msra.mxu0 0
    %880 = vmatprep.subr.bf16.mxu0 0
    %881 = vmatpush1.bf16.msra.mxu0 0
    %882 = vmatprep.subr.bf16.mxu0 0
    %883 = vmatpush1.bf16.msra.mxu0 0
    %884 = vmatprep.subr.bf16.mxu0 0
    %885 = vmatpush1.bf16.msra.mxu0 0
    %886 = vmatprep.subr.bf16.mxu0 0
    %887 = vmatpush1.bf16.msra.mxu0 0
    %888 = vmatprep.subr.bf16.mxu0 0
    %889 = vmatpush1.bf16.msra.mxu0 0
    %890 = vmatprep.subr.bf16.mxu0 0
    %891 = vmatpush1.bf16.msra.mxu0 0
    %892 = vmatprep.subr.bf16.mxu0 0
    %893 = vmatpush1.bf16.msra.mxu0 0
    %894 = vmatprep.subr.bf16.mxu0 0
    %895 = vmatpush1.bf16.msra.mxu0 0
    %896 = vmatprep.subr.bf16.mxu0 0
    %897 = vmatpush1.bf16.msra.mxu0 0
    %898 = vmatprep.subr.bf16.mxu0 0
    %899 = vmatpush1.bf16.msra.mxu0 0
    %900 = vmatprep.mubr.bf16.mxu0 0
    %901 = vmatmul.mubr.bf16.gmra.mrb[0].mxu0 %v866
    %v902 = vpop.f32.mrb[0].mxu0
    %v903 = vadd.f32 %v854, %v902
    %v904 = vpop.f32.mrb[0].mxu0
    %v905 = vpop.f32.mrb[0].mxu0
    %v906 = vadd.f32 %v857, %v905
    %v907 = vpop.f32.mrb[0].mxu0
    %908 = vdwg.mxu0
    %v909 = vadd.f32 %v903, %v218
    %v910 = vadd.f32 %v906, %v218
    %v911 = vxor.u32 %v909, 2147483648
    %v912 = vxor.u32 %v910, 2147483648
    %v913 = vmul.f32 %v911, 1.442695
    %v914 = vpow.pop %v913
    %v915 = vmul.f32 %v912, 1.442695
    %v916 = vpow.pop %v915
    %v917 = vadd.f32 %v914, 1.0
    %v918 = vadd.f32 %v916, 1.0
    %v919 = vrcp.pop %v917
    %v920 = vmul.f32 1.0, %v919
    %v921 = vrcp.pop %v918
    %v922 = vmul.f32 1.0, %v921
    %v923 = vmul.f32 %v920, 2.0
    %v924 = vmul.f32 %v922, 2.0
    %v925 = vsub.f32 %v923, 1.0
    %v926 = vsub.f32 %v924, 1.0
    %v927 = vmul.f32 %v920, %v723
    %v928 = vmul.f32 %v922, %v724
    %931 = vrot.lane.b32.xlu0 %v925, 32
    %v932 = vpop.permute.xlu0 %931
    %933 = vrot.lane.b32.xlu0 %v926, 32
    %v934 = vpop.permute.xlu0 %933
    %v937 = vmul.f32 %v920, %v932
    %v938 = vmul.f32 %v922, %v934
    %941 = vrot.lane.b32.xlu0 %v937, 32
    %v942 = vpop.permute.xlu0 %941
    %943 = vrot.lane.b32.xlu0 %v938, 32
    %v944 = vpop.permute.xlu0 %943
    %v947 = vadd.f32 %v927, %v942
    %v948 = vadd.f32 %v928, %v944
    %v949 = vtanh.pop %v947
    %v950 = vtanh.pop %v948
    %953 = vrot.lane.b32.xlu0 %v949, 32
    %v954 = vpop.permute.xlu0 %953
    %955 = vrot.lane.b32.xlu0 %v950, 32
    %v956 = vpop.permute.xlu0 %955
    %v959 = vmul.f32 %v920, %v954
    %v960 = vmul.f32 %v922, %v956
    %v961 = vpack.c.bf16 %v960, %v959
    %963 = vrot.lane.b32.xlu0 %v961, 64
    %v964 = vpop.permute.xlu0 %963
    %v966 = vsel %vm108, %v964, 0
    %968 = vmatprep.subr.bf16.mxu0 0
    %969 = vmatpush1.bf16.msra.mxu0 %v290
    %970 = vmatprep.subr.bf16.mxu0 0
    %971 = vmatpush1.bf16.msra.mxu0 %v291
    %972 = vmatprep.subr.bf16.mxu0 0
    %973 = vmatpush1.bf16.msra.mxu0 0
    %974 = vmatprep.subr.bf16.mxu0 0
    %975 = vmatpush1.bf16.msra.mxu0 0
    %976 = vmatprep.subr.bf16.mxu0 0
    %977 = vmatpush1.bf16.msra.mxu0 0
    %978 = vmatprep.subr.bf16.mxu0 0
    %979 = vmatpush1.bf16.msra.mxu0 0
    %980 = vmatprep.subr.bf16.mxu0 0
    %981 = vmatpush1.bf16.msra.mxu0 0
    %982 = vmatprep.subr.bf16.mxu0 0
    %983 = vmatpush1.bf16.msra.mxu0 0
    %984 = vmatprep.subr.bf16.mxu0 0
    %985 = vmatpush1.bf16.msra.mxu0 0
    %986 = vmatprep.subr.bf16.mxu0 0
    %987 = vmatpush1.bf16.msra.mxu0 0
    %988 = vmatprep.subr.bf16.mxu0 0
    %989 = vmatpush1.bf16.msra.mxu0 0
    %990 = vmatprep.subr.bf16.mxu0 0
    %991 = vmatpush1.bf16.msra.mxu0 0
    %992 = vmatprep.subr.bf16.mxu0 0
    %993 = vmatpush1.bf16.msra.mxu0 0
    %994 = vmatprep.subr.bf16.mxu0 0
    %995 = vmatpush1.bf16.msra.mxu0 0
    %996 = vmatprep.subr.bf16.mxu0 0
    %997 = vmatpush1.bf16.msra.mxu0 0
    %998 = vmatprep.subr.bf16.mxu0 0
    %999 = vmatpush1.bf16.msra.mxu0 0
    %1000 = vmatprep.mubr.bf16.mxu0 0
    %1001 = vmatmul.mubr.bf16.gmra.mrb[0].mxu0 %v966
    %v1002 = vpop.f32.mrb[0].mxu0
    %v1003 = vadd.f32 %v277, %v1002
    %v1004 = vpop.f32.mrb[0].mxu0
    %v1005 = vpop.f32.mrb[0].mxu0
    %v1006 = vadd.f32 %v277, %v1005
    %v1007 = vpop.f32.mrb[0].mxu0
    %1008 = vdwg.mxu0
    %1009 = vmax.xlane.f32.xlu0 %v1003
    %v1010 = vpop.xlane.xlu0 %1009
    %1011 = vmax.xlane.f32.xlu0 %v1006
    %v1012 = vpop.xlane.xlu0 %1011
    %v1013 = vsub.f32 %v1003, %v1010
    %v1014 = vsub.f32 %v1006, %v1012
    %v1015 = vmul.f32 %v1013, 1.442695
    %v1016 = vpow.pop %v1015
    %v1017 = vmul.f32 %v1014, 1.442695
    %v1018 = vpow.pop %v1017
    %1019 = vadd.xlane.f32.xlu0 %v1016
    %v1020 = vpop.xlane.xlu0 %1019
    %1021 = vadd.xlane.f32.xlu0 %v1018
    %v1022 = vpop.xlane.xlu0 %1021
    %v1023 = vlog2.pop %v1020
    %v1024 = vmul.f32 %v1023, 0.6931472
    %v1025 = vlog2.pop %v1022
    %v1026 = vmul.f32 %v1025, 0.6931472
    %v1027 = vsub.f32 %v1013, %v1024
    %v1028 = vsub.f32 %v1014, %v1026
    %v1029 = vpack.c.bf16 %v1028, %v1027
    %v1031 = vunpack.c.l.b16 %v1029
    %v1032 = vunpack.c.h.b16 %v1029
    %v1033 = vpack.c.b16 %v1031, %v1031
    %v1034 = vpack.c.b16 %v1032, %v1032
    %s1037 = scalar_lea.vmem [#allocation10], 24
    %1038 = vst [vmem:[%s1037] sm:$0xf] %v1033
    %1039 = vst [vmem:[%s1037 + $0x4] sm:$0xf] %v1034
    %s1040 = scalar_lea.vmem [#allocation2], 32
    %v1041 = vld [vmem:[%s1040] sm:$0xf]
    %v1042 = vld [vmem:[%s1040 + $0x4] sm:$0xf]
    %1043 = vmatprep.subr.bf16.mxu0 0
    %1044 = vmatpush1.bf16.msra.mxu0 %v104
    %1045 = vmatprep.subr.bf16.mxu0 0
    %1046 = vmatpush1.bf16.msra.mxu0 %v105
    %1047 = vmatprep.subr.bf16.mxu0 0
    %1048 = vmatpush1.bf16.msra.mxu0 0
    %1049 = vmatprep.subr.bf16.mxu0 0
    %1050 = vmatpush1.bf16.msra.mxu0 0
    %1051 = vmatprep.subr.bf16.mxu0 0
    %1052 = vmatpush1.bf16.msra.mxu0 0
    %1053 = vmatprep.subr.bf16.mxu0 0
    %1054 = vmatpush1.bf16.msra.mxu0 0
    %1055 = vmatprep.subr.bf16.mxu0 0
    %1056 = vmatpush1.bf16.msra.mxu0 0
    %1057 = vmatprep.subr.bf16.mxu0 0
    %1058 = vmatpush1.bf16.msra.mxu0 0
    %1059 = vmatprep.subr.bf16.mxu0 0
    %1060 = vmatpush1.bf16.msra.mxu0 0
    %1061 = vmatprep.subr.bf16.mxu0 0
    %1062 = vmatpush1.bf16.msra.mxu0 0
    %1063 = vmatprep.subr.bf16.mxu0 0
    %1064 = vmatpush1.bf16.msra.mxu0 0
    %1065 = vmatprep.subr.bf16.mxu0 0
    %1066 = vmatpush1.bf16.msra.mxu0 0
    %1067 = vmatprep.subr.bf16.mxu0 0
    %1068 = vmatpush1.bf16.msra.mxu0 0
    %1069 = vmatprep.subr.bf16.mxu0 0
    %1070 = vmatpush1.bf16.msra.mxu0 0
    %1071 = vmatprep.subr.bf16.mxu0 0
    %1072 = vmatpush1.bf16.msra.mxu0 0
    %1073 = vmatprep.subr.bf16.mxu0 0
    %1074 = vmatpush1.bf16.msra.mxu0 0
    %1075 = vmatprep.mubr.bf16.mxu0 0
    %1076 = vmatmul.mubr.bf16.gmra.mrb[0].mxu0 %v966
    %v1077 = vpop.f32.mrb[0].mxu0
    %v1078 = vadd.f32 0.0, %v1077
    %v1079 = vpop.f32.mrb[0].mxu0
    %v1080 = vpop.f32.mrb[0].mxu0
    %v1081 = vadd.f32 0.0, %v1080
    %v1082 = vpop.f32.mrb[0].mxu0
    %1083 = vdwg.mxu0
    %v1086 = vunpack.c.l.b16 %v1041
    %v1087 = vunpack.c.l.b16 %v1042
    %v1088 = vpack.c.b16 %v1087, %v1086
    %v1090 = vsel %vm108, %v1088, 0
    %1092 = vmatprep.subr.bf16.mxu0 0
    %1093 = vmatpush1.bf16.msra.mxu0 %v166
    %1094 = vmatprep.subr.bf16.mxu0 0
    %1095 = vmatpush1.bf16.msra.mxu0 %v167
    %1096 = vmatprep.subr.bf16.mxu0 0
    %1097 = vmatpush1.bf16.msra.mxu0 0
    %1098 = vmatprep.subr.bf16.mxu0 0
    %1099 = vmatpush1.bf16.msra.mxu0 0
    %1100 = vmatprep.subr.bf16.mxu0 0
    %1101 = vmatpush1.bf16.msra.mxu0 0
    %1102 = vmatprep.subr.bf16.mxu0 0
    %1103 = vmatpush1.bf16.msra.mxu0 0
    %1104 = vmatprep.subr.bf16.mxu0 0
    %1105 = vmatpush1.bf16.msra.mxu0 0
    %1106 = vmatprep.subr.bf16.mxu0 0
    %1107 = vmatpush1.bf16.msra.mxu0 0
    %1108 = vmatprep.subr.bf16.mxu0 0
    %1109 = vmatpush1.bf16.msra.mxu0 0
    %1110 = vmatprep.subr.bf16.mxu0 0
    %1111 = vmatpush1.bf16.msra.mxu0 0
    %1112 = vmatprep.subr.bf16.mxu0 0
    %1113 = vmatpush1.bf16.msra.mxu0 0
    %1114 = vmatprep.subr.bf16.mxu0 0
    %1115 = vmatpush1.bf16.msra.mxu0 0
    %1116 = vmatprep.subr.bf16.mxu0 0
    %1117 = vmatpush1.bf16.msra.mxu0 0
    %1118 = vmatprep.subr.bf16.mxu0 0
    %1119 = vmatpush1.bf16.msra.mxu0 0
    %1120 = vmatprep.subr.bf16.mxu0 0
    %1121 = vmatpush1.bf16.msra.mxu0 0
    %1122 = vmatprep.subr.bf16.mxu0 0
    %1123 = vmatpush1.bf16.msra.mxu0 0
    %1124 = vmatprep.mubr.bf16.mxu0 0
    %1125 = vmatmul.mubr.bf16.gmra.mrb[0].mxu0 %v1090
    %v1126 = vpop.f32.mrb[0].mxu0
    %v1127 = vadd.f32 %v1078, %v1126
    %v1128 = vpop.f32.mrb[0].mxu0
    %v1129 = vpop.f32.mrb[0].mxu0
    %v1130 = vadd.f32 %v1081, %v1129
    %v1131 = vpop.f32.mrb[0].mxu0
    %1132 = vdwg.mxu0
    %v1133 = vadd.f32 %v1127, %v218
    %v1134 = vadd.f32 %v1130, %v218
    %v1135 = vxor.u32 %v1133, 2147483648
    %v1136 = vxor.u32 %v1134, 2147483648
    %v1137 = vmul.f32 %v1135, 1.442695
    %v1138 = vpow.pop %v1137
    %v1139 = vmul.f32 %v1136, 1.442695
    %v1140 = vpow.pop %v1139
    %v1141 = vadd.f32 %v1138, 1.0
    %v1142 = vadd.f32 %v1140, 1.0
    %v1143 = vrcp.pop %v1141
    %v1144 = vmul.f32 1.0, %v1143
    %v1145 = vrcp.pop %v1142
    %v1146 = vmul.f32 1.0, %v1145
    %v1147 = vmul.f32 %v1144, 2.0
    %v1148 = vmul.f32 %v1146, 2.0
    %v1149 = vsub.f32 %v1147, 1.0
    %v1150 = vsub.f32 %v1148, 1.0
    %v1151 = vmul.f32 %v1144, %v947
    %v1152 = vmul.f32 %v1146, %v948
    %1155 = vrot.lane.b32.xlu0 %v1149, 32
    %v1156 = vpop.permute.xlu0 %1155
    %1157 = vrot.lane.b32.xlu0 %v1150, 32
    %v1158 = vpop.permute.xlu0 %1157
    %v1161 = vmul.f32 %v1144, %v1156
    %v1162 = vmul.f32 %v1146, %v1158
    %1165 = vrot.lane.b32.xlu0 %v1161, 32
    %v1166 = vpop.permute.xlu0 %1165
    %1167 = vrot.lane.b32.xlu0 %v1162, 32
    %v1168 = vpop.permute.xlu0 %1167
    %v1171 = vadd.f32 %v1151, %v1166
    %v1172 = vadd.f32 %v1152, %v1168
    %v1173 = vtanh.pop %v1171
    %v1174 = vtanh.pop %v1172
    %1177 = vrot.lane.b32.xlu0 %v1173, 32
    %v1178 = vpop.permute.xlu0 %1177
    %1179 = vrot.lane.b32.xlu0 %v1174, 32
    %v1180 = vpop.permute.xlu0 %1179
    %v1183 = vmul.f32 %v1144, %v1178
    %v1184 = vmul.f32 %v1146, %v1180
    %v1185 = vpack.c.bf16 %v1184, %v1183
    %1187 = vrot.lane.b32.xlu0 %v1185, 64
    %v1188 = vpop.permute.xlu0 %1187
    %v1190 = vsel %vm108, %v1188, 0
    %1192 = vmatprep.subr.bf16.mxu0 0
    %1193 = vmatpush1.bf16.msra.mxu0 %v290
    %1194 = vmatprep.subr.bf16.mxu0 0
    %1195 = vmatpush1.bf16.msra.mxu0 %v291
    %1196 = vmatprep.subr.bf16.mxu0 0
    %1197 = vmatpush1.bf16.msra.mxu0 0
    %1198 = vmatprep.subr.bf16.mxu0 0
    %1199 = vmatpush1.bf16.msra.mxu0 0
    %1200 = vmatprep.subr.bf16.mxu0 0
    %1201 = vmatpush1.bf16.msra.mxu0 0
    %1202 = vmatprep.subr.bf16.mxu0 0
    %1203 = vmatpush1.bf16.msra.mxu0 0
    %1204 = vmatprep.subr.bf16.mxu0 0
    %1205 = vmatpush1.bf16.msra.mxu0 0
    %1206 = vmatprep.subr.bf16.mxu0 0
    %1207 = vmatpush1.bf16.msra.mxu0 0
    %1208 = vmatprep.subr.bf16.mxu0 0
    %1209 = vmatpush1.bf16.msra.mxu0 0
    %1210 = vmatprep.subr.bf16.mxu0 0
    %1211 = vmatpush1.bf16.msra.mxu0 0
    %1212 = vmatprep.subr.bf16.mxu0 0
    %1213 = vmatpush1.bf16.msra.mxu0 0
    %1214 = vmatprep.subr.bf16.mxu0 0
    %1215 = vmatpush1.bf16.msra.mxu0 0
    %1216 = vmatprep.subr.bf16.mxu0 0
    %1217 = vmatpush1.bf16.msra.mxu0 0
    %1218 = vmatprep.subr.bf16.mxu0 0
    %1219 = vmatpush1.bf16.msra.mxu0 0
    %1220 = vmatprep.subr.bf16.mxu0 0
    %1221 = vmatpush1.bf16.msra.mxu0 0
    %1222 = vmatprep.subr.bf16.mxu0 0
    %1223 = vmatpush1.bf16.msra.mxu0 0
    %1224 = vmatprep.mubr.bf16.mxu0 0
    %1225 = vmatmul.mubr.bf16.gmra.mrb[0].mxu0 %v1190
    %v1226 = vpop.f32.mrb[0].mxu0
    %v1227 = vadd.f32 %v277, %v1226
    %v1228 = vpop.f32.mrb[0].mxu0
    %v1229 = vpop.f32.mrb[0].mxu0
    %v1230 = vadd.f32 %v277, %v1229
    %v1231 = vpop.f32.mrb[0].mxu0
    %1232 = vdwg.mxu0
    %1233 = vmax.xlane.f32.xlu0 %v1227
    %v1234 = vpop.xlane.xlu0 %1233
    %1235 = vmax.xlane.f32.xlu0 %v1230
    %v1236 = vpop.xlane.xlu0 %1235
    %v1237 = vsub.f32 %v1227, %v1234
    %v1238 = vsub.f32 %v1230, %v1236
    %v1239 = vmul.f32 %v1237, 1.442695
    %v1240 = vpow.pop %v1239
    %v1241 = vmul.f32 %v1238, 1.442695
    %v1242 = vpow.pop %v1241
    %1243 = vadd.xlane.f32.xlu0 %v1240
    %v1244 = vpop.xlane.xlu0 %1243
    %1245 = vadd.xlane.f32.xlu0 %v1242
    %v1246 = vpop.xlane.xlu0 %1245
    %v1247 = vlog2.pop %v1244
    %v1248 = vmul.f32 %v1247, 0.6931472
    %v1249 = vlog2.pop %v1246
    %v1250 = vmul.f32 %v1249, 0.6931472
    %v1251 = vsub.f32 %v1237, %v1248
    %v1252 = vsub.f32 %v1238, %v1250
    %v1253 = vpack.c.bf16 %v1252, %v1251
    %v1255 = vunpack.c.l.b16 %v1253
    %v1256 = vunpack.c.h.b16 %v1253
    %v1257 = vpack.c.b16 %v1255, %v1255
    %v1258 = vpack.c.b16 %v1256, %v1256
    %s1261 = scalar_lea.vmem [#allocation10], 32
    %1262 = vst [vmem:[%s1261] sm:$0xf] %v1257
    %1263 = vst [vmem:[%s1261 + $0x4] sm:$0xf] %v1258
    %s1264 = scalar_lea.vmem [#allocation2], 40
    %v1265 = vld [vmem:[%s1264] sm:$0xf]
    %v1266 = vld [vmem:[%s1264 + $0x4] sm:$0xf]
    %1267 = vmatprep.subr.bf16.mxu0 0
    %1268 = vmatpush1.bf16.msra.mxu0 %v104
    %1269 = vmatprep.subr.bf16.mxu0 0
    %1270 = vmatpush1.bf16.msra.mxu0 %v105
    %1271 = vmatprep.subr.bf16.mxu0 0
    %1272 = vmatpush1.bf16.msra.mxu0 0
    %1273 = vmatprep.subr.bf16.mxu0 0
    %1274 = vmatpush1.bf16.msra.mxu0 0
    %1275 = vmatprep.subr.bf16.mxu0 0
    %1276 = vmatpush1.bf16.msra.mxu0 0
    %1277 = vmatprep.subr.bf16.mxu0 0
    %1278 = vmatpush1.bf16.msra.mxu0 0
    %1279 = vmatprep.subr.bf16.mxu0 0
    %1280 = vmatpush1.bf16.msra.mxu0 0
    %1281 = vmatprep.subr.bf16.mxu0 0
    %1282 = vmatpush1.bf16.msra.mxu0 0
    %1283 = vmatprep.subr.bf16.mxu0 0
    %1284 = vmatpush1.bf16.msra.mxu0 0
    %1285 = vmatprep.subr.bf16.mxu0 0
    %1286 = vmatpush1.bf16.msra.mxu0 0
    %1287 = vmatprep.subr.bf16.mxu0 0
    %1288 = vmatpush1.bf16.msra.mxu0 0
    %1289 = vmatprep.subr.bf16.mxu0 0
    %1290 = vmatpush1.bf16.msra.mxu0 0
    %1291 = vmatprep.subr.bf16.mxu0 0
    %1292 = vmatpush1.bf16.msra.mxu0 0
    %1293 = vmatprep.subr.bf16.mxu0 0
    %1294 = vmatpush1.bf16.msra.mxu0 0
    %1295 = vmatprep.subr.bf16.mxu0 0
    %1296 = vmatpush1.bf16.msra.mxu0 0
    %1297 = vmatprep.subr.bf16.mxu0 0
    %1298 = vmatpush1.bf16.msra.mxu0 0
    %1299 = vmatprep.mubr.bf16.mxu0 0
    %1300 = vmatmul.mubr.bf16.gmra.mrb[0].mxu0 %v1190
    %v1301 = vpop.f32.mrb[0].mxu0
    %v1302 = vadd.f32 0.0, %v1301
    %v1303 = vpop.f32.mrb[0].mxu0
    %v1304 = vpop.f32.mrb[0].mxu0
    %v1305 = vadd.f32 0.0, %v1304
    %v1306 = vpop.f32.mrb[0].mxu0
    %1307 = vdwg.mxu0
    %v1310 = vunpack.c.l.b16 %v1265
    %v1311 = vunpack.c.l.b16 %v1266
    %v1312 = vpack.c.b16 %v1311, %v1310
    %v1314 = vsel %vm108, %v1312, 0
    %1316 = vmatprep.subr.bf16.mxu0 0
    %1317 = vmatpush1.bf16.msra.mxu0 %v166
    %1318 = vmatprep.subr.bf16.mxu0 0
    %1319 = vmatpush1.bf16.msra.mxu0 %v167
    %1320 = vmatprep.subr.bf16.mxu0 0
    %1321 = vmatpush1.bf16.msra.mxu0 0
    %1322 = vmatprep.subr.bf16.mxu0 0
    %1323 = vmatpush1.bf16.msra.mxu0 0
    %1324 = vmatprep.subr.bf16.mxu0 0
    %1325 = vmatpush1.bf16.msra.mxu0 0
    %1326 = vmatprep.subr.bf16.mxu0 0
    %1327 = vmatpush1.bf16.msra.mxu0 0
    %1328 = vmatprep.subr.bf16.mxu0 0
    %1329 = vmatpush1.bf16.msra.mxu0 0
    %1330 = vmatprep.subr.bf16.mxu0 0
    %1331 = vmatpush1.bf16.msra.mxu0 0
    %1332 = vmatprep.subr.bf16.mxu0 0
    %1333 = vmatpush1.bf16.msra.mxu0 0
    %1334 = vmatprep.subr.bf16.mxu0 0
    %1335 = vmatpush1.bf16.msra.mxu0 0
    %1336 = vmatprep.subr.bf16.mxu0 0
    %1337 = vmatpush1.bf16.msra.mxu0 0
    %1338 = vmatprep.subr.bf16.mxu0 0
    %1339 = vmatpush1.bf16.msra.mxu0 0
    %1340 = vmatprep.subr.bf16.mxu0 0
    %1341 = vmatpush1.bf16.msra.mxu0 0
    %1342 = vmatprep.subr.bf16.mxu0 0
    %1343 = vmatpush1.bf16.msra.mxu0 0
    %1344 = vmatprep.subr.bf16.mxu0 0
    %1345 = vmatpush1.bf16.msra.mxu0 0
    %1346 = vmatprep.subr.bf16.mxu0 0
    %1347 = vmatpush1.bf16.msra.mxu0 0
    %1348 = vmatprep.mubr.bf16.mxu0 0
    %1349 = vmatmul.mubr.bf16.gmra.mrb[0].mxu0 %v1314
    %v1350 = vpop.f32.mrb[0].mxu0
    %v1351 = vadd.f32 %v1302, %v1350
    %v1352 = vpop.f32.mrb[0].mxu0
    %v1353 = vpop.f32.mrb[0].mxu0
    %v1354 = vadd.f32 %v1305, %v1353
    %v1355 = vpop.f32.mrb[0].mxu0
    %1356 = vdwg.mxu0
    %v1357 = vadd.f32 %v1351, %v218
    %v1358 = vadd.f32 %v1354, %v218
    %v1359 = vxor.u32 %v1357, 2147483648
    %v1360 = vxor.u32 %v1358, 2147483648
    %v1361 = vmul.f32 %v1359, 1.442695
    %v1362 = vpow.pop %v1361
    %v1363 = vmul.f32 %v1360, 1.442695
    %v1364 = vpow.pop %v1363
    %v1365 = vadd.f32 %v1362, 1.0
    %v1366 = vadd.f32 %v1364, 1.0
    %v1367 = vrcp.pop %v1365
    %v1368 = vmul.f32 1.0, %v1367
    %v1369 = vrcp.pop %v1366
    %v1370 = vmul.f32 1.0, %v1369
    %v1371 = vmul.f32 %v1368, 2.0
    %v1372 = vmul.f32 %v1370, 2.0
    %v1373 = vsub.f32 %v1371, 1.0
    %v1374 = vsub.f32 %v1372, 1.0
    %v1375 = vmul.f32 %v1368, %v1171
    %v1376 = vmul.f32 %v1370, %v1172
    %1379 = vrot.lane.b32.xlu0 %v1373, 32
    %v1380 = vpop.permute.xlu0 %1379
    %1381 = vrot.lane.b32.xlu0 %v1374, 32
    %v1382 = vpop.permute.xlu0 %1381
    %v1385 = vmul.f32 %v1368, %v1380
    %v1386 = vmul.f32 %v1370, %v1382
    %1389 = vrot.lane.b32.xlu0 %v1385, 32
    %v1390 = vpop.permute.xlu0 %1389
    %1391 = vrot.lane.b32.xlu0 %v1386, 32
    %v1392 = vpop.permute.xlu0 %1391
    %v1395 = vadd.f32 %v1375, %v1390
    %v1396 = vadd.f32 %v1376, %v1392
    %v1397 = vtanh.pop %v1395
    %v1398 = vtanh.pop %v1396
    %1401 = vrot.lane.b32.xlu0 %v1397, 32
    %v1402 = vpop.permute.xlu0 %1401
    %1403 = vrot.lane.b32.xlu0 %v1398, 32
    %v1404 = vpop.permute.xlu0 %1403
    %v1407 = vmul.f32 %v1368, %v1402
    %v1408 = vmul.f32 %v1370, %v1404
    %v1409 = vpack.c.bf16 %v1408, %v1407
    %1411 = vrot.lane.b32.xlu0 %v1409, 64
    %v1412 = vpop.permute.xlu0 %1411
    %v1414 = vsel %vm108, %v1412, 0
    %1416 = vmatprep.subr.bf16.mxu0 0
    %1417 = vmatpush1.bf16.msra.mxu0 %v290
    %1418 = vmatprep.subr.bf16.mxu0 0
    %1419 = vmatpush1.bf16.msra.mxu0 %v291
    %1420 = vmatprep.subr.bf16.mxu0 0
    %1421 = vmatpush1.bf16.msra.mxu0 0
    %1422 = vmatprep.subr.bf16.mxu0 0
    %1423 = vmatpush1.bf16.msra.mxu0 0
    %1424 = vmatprep.subr.bf16.mxu0 0
    %1425 = vmatpush1.bf16.msra.mxu0 0
    %1426 = vmatprep.subr.bf16.mxu0 0
    %1427 = vmatpush1.bf16.msra.mxu0 0
    %1428 = vmatprep.subr.bf16.mxu0 0
    %1429 = vmatpush1.bf16.msra.mxu0 0
    %1430 = vmatprep.subr.bf16.mxu0 0
    %1431 = vmatpush1.bf16.msra.mxu0 0
    %1432 = vmatprep.subr.bf16.mxu0 0
    %1433 = vmatpush1.bf16.msra.mxu0 0
    %1434 = vmatprep.subr.bf16.mxu0 0
    %1435 = vmatpush1.bf16.msra.mxu0 0
    %1436 = vmatprep.subr.bf16.mxu0 0
    %1437 = vmatpush1.bf16.msra.mxu0 0
    %1438 = vmatprep.subr.bf16.mxu0 0
    %1439 = vmatpush1.bf16.msra.mxu0 0
    %1440 = vmatprep.subr.bf16.mxu0 0
    %1441 = vmatpush1.bf16.msra.mxu0 0
    %1442 = vmatprep.subr.bf16.mxu0 0
    %1443 = vmatpush1.bf16.msra.mxu0 0
    %1444 = vmatprep.subr.bf16.mxu0 0
    %1445 = vmatpush1.bf16.msra.mxu0 0
    %1446 = vmatprep.subr.bf16.mxu0 0
    %1447 = vmatpush1.bf16.msra.mxu0 0
    %1448 = vmatprep.mubr.bf16.mxu0 0
    %1449 = vmatmul.mubr.bf16.gmra.mrb[0].mxu0 %v1414
    %v1450 = vpop.f32.mrb[0].mxu0
    %v1451 = vadd.f32 %v277, %v1450
    %v1452 = vpop.f32.mrb[0].mxu0
    %v1453 = vpop.f32.mrb[0].mxu0
    %v1454 = vadd.f32 %v277, %v1453
    %v1455 = vpop.f32.mrb[0].mxu0
    %1456 = vdwg.mxu0
    %1457 = vmax.xlane.f32.xlu0 %v1451
    %v1458 = vpop.xlane.xlu0 %1457
    %1459 = vmax.xlane.f32.xlu0 %v1454
    %v1460 = vpop.xlane.xlu0 %1459
    %v1461 = vsub.f32 %v1451, %v1458
    %v1462 = vsub.f32 %v1454, %v1460
    %v1463 = vmul.f32 %v1461, 1.442695
    %v1464 = vpow.pop %v1463
    %v1465 = vmul.f32 %v1462, 1.442695
    %v1466 = vpow.pop %v1465
    %1467 = vadd.xlane.f32.xlu0 %v1464
    %v1468 = vpop.xlane.xlu0 %1467
    %1469 = vadd.xlane.f32.xlu0 %v1466
    %v1470 = vpop.xlane.xlu0 %1469
    %v1471 = vlog2.pop %v1468
    %v1472 = vmul.f32 %v1471, 0.6931472
    %v1473 = vlog2.pop %v1470
    %v1474 = vmul.f32 %v1473, 0.6931472
    %v1475 = vsub.f32 %v1461, %v1472
    %v1476 = vsub.f32 %v1462, %v1474
    %v1477 = vpack.c.bf16 %v1476, %v1475
    %v1479 = vunpack.c.l.b16 %v1477
    %v1480 = vunpack.c.h.b16 %v1477
    %v1481 = vpack.c.b16 %v1479, %v1479
    %v1482 = vpack.c.b16 %v1480, %v1480
    %s1485 = scalar_lea.vmem [#allocation10], 40
    %1486 = vst [vmem:[%s1485] sm:$0xf] %v1481
    %1487 = vst [vmem:[%s1485 + $0x4] sm:$0xf] %v1482
    %s1488 = scalar_lea.vmem [#allocation2], 48
    %v1489 = vld [vmem:[%s1488] sm:$0xf]
    %v1490 = vld [vmem:[%s1488 + $0x4] sm:$0xf]
    %1491 = vmatprep.subr.bf16.mxu0 0
    %1492 = vmatpush1.bf16.msra.mxu0 %v104
    %1493 = vmatprep.subr.bf16.mxu0 0
    %1494 = vmatpush1.bf16.msra.mxu0 %v105
    %1495 = vmatprep.subr.bf16.mxu0 0
    %1496 = vmatpush1.bf16.msra.mxu0 0
    %1497 = vmatprep.subr.bf16.mxu0 0
    %1498 = vmatpush1.bf16.msra.mxu0 0
    %1499 = vmatprep.subr.bf16.mxu0 0
    %1500 = vmatpush1.bf16.msra.mxu0 0
    %1501 = vmatprep.subr.bf16.mxu0 0
    %1502 = vmatpush1.bf16.msra.mxu0 0
    %1503 = vmatprep.subr.bf16.mxu0 0
    %1504 = vmatpush1.bf16.msra.mxu0 0
    %1505 = vmatprep.subr.bf16.mxu0 0
    %1506 = vmatpush1.bf16.msra.mxu0 0
    %1507 = vmatprep.subr.bf16.mxu0 0
    %1508 = vmatpush1.bf16.msra.mxu0 0
    %1509 = vmatprep.subr.bf16.mxu0 0
    %1510 = vmatpush1.bf16.msra.mxu0 0
    %1511 = vmatprep.subr.bf16.mxu0 0
    %1512 = vmatpush1.bf16.msra.mxu0 0
    %1513 = vmatprep.subr.bf16.mxu0 0
    %1514 = vmatpush1.bf16.msra.mxu0 0
    %1515 = vmatprep.subr.bf16.mxu0 0
    %1516 = vmatpush1.bf16.msra.mxu0 0
    %1517 = vmatprep.subr.bf16.mxu0 0
    %1518 = vmatpush1.bf16.msra.mxu0 0
    %1519 = vmatprep.subr.bf16.mxu0 0
    %1520 = vmatpush1.bf16.msra.mxu0 0
    %1521 = vmatprep.subr.bf16.mxu0 0
    %1522 = vmatpush1.bf16.msra.mxu0 0
    %1523 = vmatprep.mubr.bf16.mxu0 0
    %1524 = vmatmul.mubr.bf16.gmra.mrb[0].mxu0 %v1414
    %v1525 = vpop.f32.mrb[0].mxu0
    %v1526 = vadd.f32 0.0, %v1525
    %v1527 = vpop.f32.mrb[0].mxu0
    %v1528 = vpop.f32.mrb[0].mxu0
    %v1529 = vadd.f32 0.0, %v1528
    %v1530 = vpop.f32.mrb[0].mxu0
    %1531 = vdwg.mxu0
    %v1534 = vunpack.c.l.b16 %v1489
    %v1535 = vunpack.c.l.b16 %v1490
    %v1536 = vpack.c.b16 %v1535, %v1534
    %v1538 = vsel %vm108, %v1536, 0
    %1540 = vmatprep.subr.bf16.mxu0 0
    %1541 = vmatpush1.bf16.msra.mxu0 %v166
    %1542 = vmatprep.subr.bf16.mxu0 0
    %1543 = vmatpush1.bf16.msra.mxu0 %v167
    %1544 = vmatprep.subr.bf16.mxu0 0
    %1545 = vmatpush1.bf16.msra.mxu0 0
    %1546 = vmatprep.subr.bf16.mxu0 0
    %1547 = vmatpush1.bf16.msra.mxu0 0
    %1548 = vmatprep.subr.bf16.mxu0 0
    %1549 = vmatpush1.bf16.msra.mxu0 0
    %1550 = vmatprep.subr.bf16.mxu0 0
    %1551 = vmatpush1.bf16.msra.mxu0 0
    %1552 = vmatprep.subr.bf16.mxu0 0
    %1553 = vmatpush1.bf16.msra.mxu0 0
    %1554 = vmatprep.subr.bf16.mxu0 0
    %1555 = vmatpush1.bf16.msra.mxu0 0
    %1556 = vmatprep.subr.bf16.mxu0 0
    %1557 = vmatpush1.bf16.msra.mxu0 0
    %1558 = vmatprep.subr.bf16.mxu0 0
    %1559 = vmatpush1.bf16.msra.mxu0 0
    %1560 = vmatprep.subr.bf16.mxu0 0
    %1561 = vmatpush1.bf16.msra.mxu0 0
    %1562 = vmatprep.subr.bf16.mxu0 0
    %1563 = vmatpush1.bf16.msra.mxu0 0
    %1564 = vmatprep.subr.bf16.mxu0 0
    %1565 = vmatpush1.bf16.msra.mxu0 0
    %1566 = vmatprep.subr.bf16.mxu0 0
    %1567 = vmatpush1.bf16.msra.mxu0 0
    %1568 = vmatprep.subr.bf16.mxu0 0
    %1569 = vmatpush1.bf16.msra.mxu0 0
    %1570 = vmatprep.subr.bf16.mxu0 0
    %1571 = vmatpush1.bf16.msra.mxu0 0
    %1572 = vmatprep.mubr.bf16.mxu0 0
    %1573 = vmatmul.mubr.bf16.gmra.mrb[0].mxu0 %v1538
    %v1574 = vpop.f32.mrb[0].mxu0
    %v1575 = vadd.f32 %v1526, %v1574
    %v1576 = vpop.f32.mrb[0].mxu0
    %v1577 = vpop.f32.mrb[0].mxu0
    %v1578 = vadd.f32 %v1529, %v1577
    %v1579 = vpop.f32.mrb[0].mxu0
    %1580 = vdwg.mxu0
    %v1581 = vadd.f32 %v1575, %v218
    %v1582 = vadd.f32 %v1578, %v218
    %v1583 = vxor.u32 %v1581, 2147483648
    %v1584 = vxor.u32 %v1582, 2147483648
    %v1585 = vmul.f32 %v1583, 1.442695
    %v1586 = vpow.pop %v1585
    %v1587 = vmul.f32 %v1584, 1.442695
    %v1588 = vpow.pop %v1587
    %v1589 = vadd.f32 %v1586, 1.0
    %v1590 = vadd.f32 %v1588, 1.0
    %v1591 = vrcp.pop %v1589
    %v1592 = vmul.f32 1.0, %v1591
    %v1593 = vrcp.pop %v1590
    %v1594 = vmul.f32 1.0, %v1593
    %v1595 = vmul.f32 %v1592, 2.0
    %v1596 = vmul.f32 %v1594, 2.0
    %v1597 = vsub.f32 %v1595, 1.0
    %v1598 = vsub.f32 %v1596, 1.0
    %v1599 = vmul.f32 %v1592, %v1395
    %v1600 = vmul.f32 %v1594, %v1396
    %1603 = vrot.lane.b32.xlu0 %v1597, 32
    %v1604 = vpop.permute.xlu0 %1603
    %1605 = vrot.lane.b32.xlu0 %v1598, 32
    %v1606 = vpop.permute.xlu0 %1605
    %v1609 = vmul.f32 %v1592, %v1604
    %v1610 = vmul.f32 %v1594, %v1606
    %1613 = vrot.lane.b32.xlu0 %v1609, 32
    %v1614 = vpop.permute.xlu0 %1613
    %1615 = vrot.lane.b32.xlu0 %v1610, 32
    %v1616 = vpop.permute.xlu0 %1615
    %v1619 = vadd.f32 %v1599, %v1614
    %v1620 = vadd.f32 %v1600, %v1616
    %v1621 = vtanh.pop %v1619
    %v1622 = vtanh.pop %v1620
    %1625 = vrot.lane.b32.xlu0 %v1621, 32
    %v1626 = vpop.permute.xlu0 %1625
    %1627 = vrot.lane.b32.xlu0 %v1622, 32
    %v1628 = vpop.permute.xlu0 %1627
    %v1631 = vmul.f32 %v1592, %v1626
    %v1632 = vmul.f32 %v1594, %v1628
    %v1633 = vpack.c.bf16 %v1632, %v1631
    %1635 = vrot.lane.b32.xlu0 %v1633, 64
    %v1636 = vpop.permute.xlu0 %1635
    %v1638 = vsel %vm108, %v1636, 0
    %1640 = vmatprep.subr.bf16.mxu0 0
    %1641 = vmatpush1.bf16.msra.mxu0 %v290
    %1642 = vmatprep.subr.bf16.mxu0 0
    %1643 = vmatpush1.bf16.msra.mxu0 %v291
    %1644 = vmatprep.subr.bf16.mxu0 0
    %1645 = vmatpush1.bf16.msra.mxu0 0
    %1646 = vmatprep.subr.bf16.mxu0 0
    %1647 = vmatpush1.bf16.msra.mxu0 0
    %1648 = vmatprep.subr.bf16.mxu0 0
    %1649 = vmatpush1.bf16.msra.mxu0 0
    %1650 = vmatprep.subr.bf16.mxu0 0
    %1651 = vmatpush1.bf16.msra.mxu0 0
    %1652 = vmatprep.subr.bf16.mxu0 0
    %1653 = vmatpush1.bf16.msra.mxu0 0
    %1654 = vmatprep.subr.bf16.mxu0 0
    %1655 = vmatpush1.bf16.msra.mxu0 0
    %1656 = vmatprep.subr.bf16.mxu0 0
    %1657 = vmatpush1.bf16.msra.mxu0 0
    %1658 = vmatprep.subr.bf16.mxu0 0
    %1659 = vmatpush1.bf16.msra.mxu0 0
    %1660 = vmatprep.subr.bf16.mxu0 0
    %1661 = vmatpush1.bf16.msra.mxu0 0
    %1662 = vmatprep.subr.bf16.mxu0 0
    %1663 = vmatpush1.bf16.msra.mxu0 0
    %1664 = vmatprep.subr.bf16.mxu0 0
    %1665 = vmatpush1.bf16.msra.mxu0 0
    %1666 = vmatprep.subr.bf16.mxu0 0
    %1667 = vmatpush1.bf16.msra.mxu0 0
    %1668 = vmatprep.subr.bf16.mxu0 0
    %1669 = vmatpush1.bf16.msra.mxu0 0
    %1670 = vmatprep.subr.bf16.mxu0 0
    %1671 = vmatpush1.bf16.msra.mxu0 0
    %1672 = vmatprep.mubr.bf16.mxu0 0
    %1673 = vmatmul.mubr.bf16.gmra.mrb[0].mxu0 %v1638
    %v1674 = vpop.f32.mrb[0].mxu0
    %v1675 = vadd.f32 %v277, %v1674
    %v1676 = vpop.f32.mrb[0].mxu0
    %v1677 = vpop.f32.mrb[0].mxu0
    %v1678 = vadd.f32 %v277, %v1677
    %v1679 = vpop.f32.mrb[0].mxu0
    %1680 = vdwg.mxu0
    %1681 = vmax.xlane.f32.xlu0 %v1675
    %v1682 = vpop.xlane.xlu0 %1681
    %1683 = vmax.xlane.f32.xlu0 %v1678
    %v1684 = vpop.xlane.xlu0 %1683
    %v1685 = vsub.f32 %v1675, %v1682
    %v1686 = vsub.f32 %v1678, %v1684
    %v1687 = vmul.f32 %v1685, 1.442695
    %v1688 = vpow.pop %v1687
    %v1689 = vmul.f32 %v1686, 1.442695
    %v1690 = vpow.pop %v1689
    %1691 = vadd.xlane.f32.xlu0 %v1688
    %v1692 = vpop.xlane.xlu0 %1691
    %1693 = vadd.xlane.f32.xlu0 %v1690
    %v1694 = vpop.xlane.xlu0 %1693
    %v1695 = vlog2.pop %v1692
    %v1696 = vmul.f32 %v1695, 0.6931472
    %v1697 = vlog2.pop %v1694
    %v1698 = vmul.f32 %v1697, 0.6931472
    %v1699 = vsub.f32 %v1685, %v1696
    %v1700 = vsub.f32 %v1686, %v1698
    %v1701 = vpack.c.bf16 %v1700, %v1699
    %v1703 = vunpack.c.l.b16 %v1701
    %v1704 = vunpack.c.h.b16 %v1701
    %v1705 = vpack.c.b16 %v1703, %v1703
    %v1706 = vpack.c.b16 %v1704, %v1704
    %s1709 = scalar_lea.vmem [#allocation10], 48
    %1710 = vst [vmem:[%s1709] sm:$0xf] %v1705
    %1711 = vst [vmem:[%s1709 + $0x4] sm:$0xf] %v1706
    %s1712 = scalar_lea.vmem [#allocation2], 56
    %v1713 = vld [vmem:[%s1712] sm:$0xf]
    %v1714 = vld [vmem:[%s1712 + $0x4] sm:$0xf]
    %1715 = vmatprep.subr.bf16.mxu0 0
    %1716 = vmatpush1.bf16.msra.mxu0 %v104
    %1717 = vmatprep.subr.bf16.mxu0 0
    %1718 = vmatpush1.bf16.msra.mxu0 %v105
    %1719 = vmatprep.subr.bf16.mxu0 0
    %1720 = vmatpush1.bf16.msra.mxu0 0
    %1721 = vmatprep.subr.bf16.mxu0 0
    %1722 = vmatpush1.bf16.msra.mxu0 0
    %1723 = vmatprep.subr.bf16.mxu0 0
    %1724 = vmatpush1.bf16.msra.mxu0 0
    %1725 = vmatprep.subr.bf16.mxu0 0
    %1726 = vmatpush1.bf16.msra.mxu0 0
    %1727 = vmatprep.subr.bf16.mxu0 0
    %1728 = vmatpush1.bf16.msra.mxu0 0
    %1729 = vmatprep.subr.bf16.mxu0 0
    %1730 = vmatpush1.bf16.msra.mxu0 0
    %1731 = vmatprep.subr.bf16.mxu0 0
    %1732 = vmatpush1.bf16.msra.mxu0 0
    %1733 = vmatprep.subr.bf16.mxu0 0
    %1734 = vmatpush1.bf16.msra.mxu0 0
    %1735 = vmatprep.subr.bf16.mxu0 0
    %1736 = vmatpush1.bf16.msra.mxu0 0
    %1737 = vmatprep.subr.bf16.mxu0 0
    %1738 = vmatpush1.bf16.msra.mxu0 0
    %1739 = vmatprep.subr.bf16.mxu0 0
    %1740 = vmatpush1.bf16.msra.mxu0 0
    %1741 = vmatprep.subr.bf16.mxu0 0
    %1742 = vmatpush1.bf16.msra.mxu0 0
    %1743 = vmatprep.subr.bf16.mxu0 0
    %1744 = vmatpush1.bf16.msra.mxu0 0
    %1745 = vmatprep.subr.bf16.mxu0 0
    %1746 = vmatpush1.bf16.msra.mxu0 0
    %1747 = vmatprep.mubr.bf16.mxu0 0
    %1748 = vmatmul.mubr.bf16.gmra.mrb[0].mxu0 %v1638
    %v1749 = vpop.f32.mrb[0].mxu0
    %v1750 = vadd.f32 0.0, %v1749
    %v1751 = vpop.f32.mrb[0].mxu0
    %v1752 = vpop.f32.mrb[0].mxu0
    %v1753 = vadd.f32 0.0, %v1752
    %v1754 = vpop.f32.mrb[0].mxu0
    %1755 = vdwg.mxu0
    %v1758 = vunpack.c.l.b16 %v1713
    %v1759 = vunpack.c.l.b16 %v1714
    %v1760 = vpack.c.b16 %v1759, %v1758
    %v1762 = vsel %vm108, %v1760, 0
    %1764 = vmatprep.subr.bf16.mxu0 0
    %1765 = vmatpush1.bf16.msra.mxu0 %v166
    %1766 = vmatprep.subr.bf16.mxu0 0
    %1767 = vmatpush1.bf16.msra.mxu0 %v167
    %1768 = vmatprep.subr.bf16.mxu0 0
    %1769 = vmatpush1.bf16.msra.mxu0 0
    %1770 = vmatprep.subr.bf16.mxu0 0
    %1771 = vmatpush1.bf16.msra.mxu0 0
    %1772 = vmatprep.subr.bf16.mxu0 0
    %1773 = vmatpush1.bf16.msra.mxu0 0
    %1774 = vmatprep.subr.bf16.mxu0 0
    %1775 = vmatpush1.bf16.msra.mxu0 0
    %1776 = vmatprep.subr.bf16.mxu0 0
    %1777 = vmatpush1.bf16.msra.mxu0 0
    %1778 = vmatprep.subr.bf16.mxu0 0
    %1779 = vmatpush1.bf16.msra.mxu0 0
    %1780 = vmatprep.subr.bf16.mxu0 0
    %1781 = vmatpush1.bf16.msra.mxu0 0
    %1782 = vmatprep.subr.bf16.mxu0 0
    %1783 = vmatpush1.bf16.msra.mxu0 0
    %1784 = vmatprep.subr.bf16.mxu0 0
    %1785 = vmatpush1.bf16.msra.mxu0 0
    %1786 = vmatprep.subr.bf16.mxu0 0
    %1787 = vmatpush1.bf16.msra.mxu0 0
    %1788 = vmatprep.subr.bf16.mxu0 0
    %1789 = vmatpush1.bf16.msra.mxu0 0
    %1790 = vmatprep.subr.bf16.mxu0 0
    %1791 = vmatpush1.bf16.msra.mxu0 0
    %1792 = vmatprep.subr.bf16.mxu0 0
    %1793 = vmatpush1.bf16.msra.mxu0 0
    %1794 = vmatprep.subr.bf16.mxu0 0
    %1795 = vmatpush1.bf16.msra.mxu0 0
    %1796 = vmatprep.mubr.bf16.mxu0 0
    %1797 = vmatmul.mubr.bf16.gmra.mrb[0].mxu0 %v1762
    %v1798 = vpop.f32.mrb[0].mxu0
    %v1799 = vadd.f32 %v1750, %v1798
    %v1800 = vpop.f32.mrb[0].mxu0
    %v1801 = vpop.f32.mrb[0].mxu0
    %v1802 = vadd.f32 %v1753, %v1801
    %v1803 = vpop.f32.mrb[0].mxu0
    %1804 = vdwg.mxu0
    %v1805 = vadd.f32 %v1799, %v218
    %v1806 = vadd.f32 %v1802, %v218
    %v1807 = vxor.u32 %v1805, 2147483648
    %v1808 = vxor.u32 %v1806, 2147483648
    %v1809 = vmul.f32 %v1807, 1.442695
    %v1810 = vpow.pop %v1809
    %v1811 = vmul.f32 %v1808, 1.442695
    %v1812 = vpow.pop %v1811
    %v1813 = vadd.f32 %v1810, 1.0
    %v1814 = vadd.f32 %v1812, 1.0
    %v1815 = vrcp.pop %v1813
    %v1816 = vmul.f32 1.0, %v1815
    %v1817 = vrcp.pop %v1814
    %v1818 = vmul.f32 1.0, %v1817
    %v1819 = vmul.f32 %v1816, 2.0
    %v1820 = vmul.f32 %v1818, 2.0
    %v1821 = vsub.f32 %v1819, 1.0
    %v1822 = vsub.f32 %v1820, 1.0
    %v1823 = vmul.f32 %v1816, %v1619
    %v1824 = vmul.f32 %v1818, %v1620
    %1827 = vrot.lane.b32.xlu0 %v1821, 32
    %v1828 = vpop.permute.xlu0 %1827
    %1829 = vrot.lane.b32.xlu0 %v1822, 32
    %v1830 = vpop.permute.xlu0 %1829
    %v1833 = vmul.f32 %v1816, %v1828
    %v1834 = vmul.f32 %v1818, %v1830
    %1837 = vrot.lane.b32.xlu0 %v1833, 32
    %v1838 = vpop.permute.xlu0 %1837
    %1839 = vrot.lane.b32.xlu0 %v1834, 32
    %v1840 = vpop.permute.xlu0 %1839
    %v1843 = vadd.f32 %v1823, %v1838
    %v1844 = vadd.f32 %v1824, %v1840
    %v1845 = vtanh.pop %v1843
    %v1846 = vtanh.pop %v1844
    %1849 = vrot.lane.b32.xlu0 %v1845, 32
    %v1850 = vpop.permute.xlu0 %1849
    %1851 = vrot.lane.b32.xlu0 %v1846, 32
    %v1852 = vpop.permute.xlu0 %1851
    %v1855 = vmul.f32 %v1816, %v1850
    %v1856 = vmul.f32 %v1818, %v1852
    %v1857 = vpack.c.bf16 %v1856, %v1855
    %1859 = vrot.lane.b32.xlu0 %v1857, 64
    %v1860 = vpop.permute.xlu0 %1859
    %v1862 = vsel %vm108, %v1860, 0
    %1864 = vmatprep.subr.bf16.mxu0 0
    %1865 = vmatpush1.bf16.msra.mxu0 %v290
    %1866 = vmatprep.subr.bf16.mxu0 0
    %1867 = vmatpush1.bf16.msra.mxu0 %v291
    %1868 = vmatprep.subr.bf16.mxu0 0
    %1869 = vmatpush1.bf16.msra.mxu0 0
    %1870 = vmatprep.subr.bf16.mxu0 0
    %1871 = vmatpush1.bf16.msra.mxu0 0
    %1872 = vmatprep.subr.bf16.mxu0 0
    %1873 = vmatpush1.bf16.msra.mxu0 0
    %1874 = vmatprep.subr.bf16.mxu0 0
    %1875 = vmatpush1.bf16.msra.mxu0 0
    %1876 = vmatprep.subr.bf16.mxu0 0
    %1877 = vmatpush1.bf16.msra.mxu0 0
    %1878 = vmatprep.subr.bf16.mxu0 0
    %1879 = vmatpush1.bf16.msra.mxu0 0
    %1880 = vmatprep.subr.bf16.mxu0 0
    %1881 = vmatpush1.bf16.msra.mxu0 0
    %1882 = vmatprep.subr.bf16.mxu0 0
    %1883 = vmatpush1.bf16.msra.mxu0 0
    %1884 = vmatprep.subr.bf16.mxu0 0
    %1885 = vmatpush1.bf16.msra.mxu0 0
    %1886 = vmatprep.subr.bf16.mxu0 0
    %1887 = vmatpush1.bf16.msra.mxu0 0
    %1888 = vmatprep.subr.bf16.mxu0 0
    %1889 = vmatpush1.bf16.msra.mxu0 0
    %1890 = vmatprep.subr.bf16.mxu0 0
    %1891 = vmatpush1.bf16.msra.mxu0 0
    %1892 = vmatprep.subr.bf16.mxu0 0
    %1893 = vmatpush1.bf16.msra.mxu0 0
    %1894 = vmatprep.subr.bf16.mxu0 0
    %1895 = vmatpush1.bf16.msra.mxu0 0
    %1896 = vmatprep.mubr.bf16.mxu0 0
    %1897 = vmatmul.mubr.bf16.gmra.mrb[0].mxu0 %v1862
    %v1898 = vpop.f32.mrb[0].mxu0
    %v1899 = vadd.f32 %v277, %v1898
    %v1900 = vpop.f32.mrb[0].mxu0
    %v1901 = vpop.f32.mrb[0].mxu0
    %v1902 = vadd.f32 %v277, %v1901
    %v1903 = vpop.f32.mrb[0].mxu0
    %1904 = vdwg.mxu0
    %1905 = vmax.xlane.f32.xlu0 %v1899
    %v1906 = vpop.xlane.xlu0 %1905
    %1907 = vmax.xlane.f32.xlu0 %v1902
    %v1908 = vpop.xlane.xlu0 %1907
    %v1909 = vsub.f32 %v1899, %v1906
    %v1910 = vsub.f32 %v1902, %v1908
    %v1911 = vmul.f32 %v1909, 1.442695
    %v1912 = vpow.pop %v1911
    %v1913 = vmul.f32 %v1910, 1.442695
    %v1914 = vpow.pop %v1913
    %1915 = vadd.xlane.f32.xlu0 %v1912
    %v1916 = vpop.xlane.xlu0 %1915
    %1917 = vadd.xlane.f32.xlu0 %v1914
    %v1918 = vpop.xlane.xlu0 %1917
    %v1919 = vlog2.pop %v1916
    %v1920 = vmul.f32 %v1919, 0.6931472
    %v1921 = vlog2.pop %v1918
    %v1922 = vmul.f32 %v1921, 0.6931472
    %v1923 = vsub.f32 %v1909, %v1920
    %v1924 = vsub.f32 %v1910, %v1922
    %v1925 = vpack.c.bf16 %v1924, %v1923
    %v1927 = vunpack.c.l.b16 %v1925
    %v1928 = vunpack.c.h.b16 %v1925
    %v1929 = vpack.c.b16 %v1927, %v1927
    %v1930 = vpack.c.b16 %v1928, %v1928
    %s1933 = scalar_lea.vmem [#allocation10], 56
    %1934 = vst [vmem:[%s1933] sm:$0xf] %v1929
    %1935 = vst [vmem:[%s1933 + $0x4] sm:$0xf] %v1930
    // Predicated region
    $region42: #{tpu_custom_call.1} parent=1 // pred_check
      _
    $region43: #{tpu_custom_call.1} parent=1 // pred_check_branch
      %1937 = sbr.rel (0) target = $region45
    $region44: #{tpu_custom_call.1} parent=1 // pred_region
      %s1939 = ssub.s32 1024, 1024
      %1940 = vsyncadd [#allocation4], %s1939
      %s1941 = sshll.u32 [#allocation10], 4
      %s1942 = int_to_ptr.vmem [resolvable:$true] %s1941
      %1947 = dma.vmem_to_hbm [thread:$0]  %s1942, 1024, %s6, [#allocation4], 64, 64, 4
    $region45: #{tpu_custom_call.1} parent=1 // pred_fallthru
      _
    // Predicated region
    $region46: #{tpu_custom_call.1} parent=1 // pred_check
      _
    $region47: #{tpu_custom_call.1} parent=1 // pred_check_branch
      %1949 = sbr.rel (0) target = $region49
    $region48: #{tpu_custom_call.1} parent=1 // pred_region
      %1950 = dma.done [#allocation4], 1024
    $region49: #{tpu_custom_call.1} parent=1 // pred_fallthru
      _
    %1951 = vsyncpa [#allocation3], 1
    %1952 = vsyncpa [#allocation6], 1
    %1953 = vsyncpa [#allocation9], 1
    %1954 = vsyncpa [#allocation4], 1

</llo_original>
